<compile_context>
chip_gen: v5e
topology: v5e:2x2
jax: 0.10.0
libtpu: 0.0.40
codegen_flags: <defaults>
</compile_context>

<pallas_src>
import functools

import numpy as np
import jax
import jax.numpy as jnp
from jax.experimental import pallas as pl
from jax.experimental.pallas import tpu as pltpu


def _round_up(x, m):
    return ((x + m - 1) // m) * m


# --------------------------------------------------------------------------- #
# Kernel 1: alphas = mask * relu(sigmoid(Linear(relu(conv1d(pad(h))))) * sf-nt) #
# grid = (B,), one full-time block per batch element, K-tap conv in-kernel.     #
# --------------------------------------------------------------------------- #
def _alphas_kernel(hq_ref, mask_ref, wc_ref, bc_ref, wo_ref, bo_ref, alphas_ref,
                   *, K, T, smooth_factor, noise_threshold):
    # hq_ref   : (1, T+K-1, D) halo-padded hidden (f32)
    # mask_ref : (1, T, 1)     padding mask (f32)
    # wc_ref   : (K, D, D)     conv weights, wc[k] = conv_w[:, :, k].T  (bf16)
    # bc_ref   : (1, D)  conv bias   wo_ref : (1, D)  Linear weight row
    # bo_ref   : (1, 1)  Linear bias alphas_ref : (1, T, 1)
    D = hq_ref.shape[-1]
    acc = jnp.zeros((T, D), jnp.float32)
    for k in range(K):                                    # K static shifted taps
        tap = hq_ref[0, k:k + T, :].astype(jnp.bfloat16)  # bf16 operands, f32 acc
        acc = acc + jnp.dot(tap, wc_ref[k], preferred_element_type=jnp.float32)
    h = jnp.maximum(acc + bc_ref[...], 0.0)               # relu(conv1d(queries))
    # Linear(D, 1): VPU multiply + lane reduction (avoid a width-1 MXU matmul).
    logits = jnp.sum(h * wo_ref[...], axis=-1, keepdims=True) + bo_ref[...]  # (T,1)
    a = jax.nn.sigmoid(logits)
    a = jnp.maximum(a * smooth_factor - noise_threshold, 0.0)
    a = a * mask_ref[0]                                    # padding mask (T, 1)
    alphas_ref[...] = a.reshape(1, T, 1)


# --------------------------------------------------------------------------- #
# Kernel 2: batch-vectorized CIF integrate-and-fire scan, native (B,T,*) layout #
# grid = (batch_groups [parallel], time_chunks [arbitrary])                     #
# --------------------------------------------------------------------------- #
def _cif_kernel(alpha_ref, hid_ref, fires_ref, frames_ref, integ_ref, frame_ref,
                *, tc, threshold):
    # alpha_ref : (BG, tc, 1)   hid_ref   : (BG, tc, D)
    # fires_ref : (BG, tc, 1)   frames_ref: (BG, tc, D)
    # integ_ref : (BG, 1)  VMEM carry     frame_ref : (BG, D)  VMEM carry
    @pl.when(pl.program_id(1) == 0)
    def _init():
        integ_ref[...] = jnp.zeros_like(integ_ref)
        frame_ref[...] = jnp.zeros_like(frame_ref)

    integ = integ_ref[...]                                 # (BG, 1)
    frame = frame_ref[...]                                 # (BG, D)
    # Statically unrolled chunk: every per-step ref access uses constant indices
    # (no dynamic mid-dim slicing), carry threads through the trace.
    for i in range(tc):
        alpha = alpha_ref[:, i, :]                         # (BG, 1)
        h_t = hid_ref[:, i, :]                             # (BG, D)
        dist_comp = 1.0 - integ
        integ = integ + alpha
        fires_ref[:, i, :] = integ
        fire = integ >= threshold                          # (BG, 1) bool
        cur = jnp.where(fire, dist_comp, alpha)
        rem = alpha - cur
        frame = frame + cur * h_t
        frames_ref[:, i, :] = frame
        frame = jnp.where(fire, rem * h_t, frame)
        integ = jnp.where(fire, integ - 1.0, integ)
    integ_ref[...] = integ
    frame_ref[...] = frame
    # NOTE: zero-alpha padded tail steps never fire (carried integrate < threshold),
    # but the end-of-grid carry is not the true final state if a tail were added.


# --------------------------------------------------------------------------- #
# Parameters (Conv1d(idim, idim, K) + Linear(idim, 1); dropout unused in fwd)   #
# --------------------------------------------------------------------------- #
def init_params(key, idim, K):
    k1, k2, k3, k4 = jax.random.split(key, 4)
    return dict(
        conv_w=jax.random.normal(k1, (idim, idim, K), jnp.float32) * 0.05,  # (out, in, K)
        conv_b=jax.random.normal(k2, (idim,), jnp.float32) * 0.05,
        out_w=jax.random.normal(k3, (1, idim), jnp.float32) * 0.2,          # Linear(idim, 1)
        out_b=jax.random.normal(k4, (1,), jnp.float32) * 0.1,
    )


# --------------------------------------------------------------------------- #
# Forward (tail_threshold=0, no target_label), fixed-shape jitted core          #
# --------------------------------------------------------------------------- #
@functools.partial(jax.jit, static_argnames=("l_order", "r_order", "threshold",
                                              "smooth_factor", "noise_threshold"))
def _forward_core(hidden, mask, params, *, l_order, r_order, threshold,
                  smooth_factor, noise_threshold):
    B, T, D = hidden.shape
    K = l_order + r_order + 1
    hidden = hidden.astype(jnp.float32)

    # ---------------- alphas: halo-padded hidden -> in-kernel K-tap conv -------
    hq = jnp.pad(hidden, ((0, 0), (l_order, r_order), (0, 0)))         # (B, T+K-1, D)
    wc = jnp.stack([params["conv_w"][:, :, k].T for k in range(K)],
                   axis=0).astype(jnp.bfloat16)                        # (K, D, D)
    bc = params["conv_b"].reshape(1, D).astype(jnp.float32)
    wo = params["out_w"].reshape(1, D).astype(jnp.float32)
    bo = params["out_b"].reshape(1, 1).astype(jnp.float32)
    mask_bt1 = jnp.transpose(mask.astype(jnp.float32), (0, 2, 1))      # (B, T, 1)

    alphas_bt1 = pl.pallas_call(
        functools.partial(_alphas_kernel, K=K, T=T,
                          smooth_factor=float(smooth_factor),
                          noise_threshold=float(noise_threshold)),
        grid=(B,),
        in_specs=[
            pl.BlockSpec((1, T + K - 1, D), lambda b: (b, 0, 0)),
            pl.BlockSpec((1, T, 1), lambda b: (b, 0, 0)),
            pl.BlockSpec((K, D, D), lambda b: (0, 0, 0)),
            pl.BlockSpec((1, D), lambda b: (0, 0)),
            pl.BlockSpec((1, D), lambda b: (0, 0)),
            pl.BlockSpec((1, 1), lambda b: (0, 0)),
        ],
        out_specs=pl.BlockSpec((1, T, 1), lambda b: (b, 0, 0)),
        out_shape=jax.ShapeDtypeStruct((B, T, 1), jnp.float32),
        compiler_params=pltpu.CompilerParams(
            dimension_semantics=("parallel",),
            # 48 MiB: large blocks on v5e/v6e (128 MiB VMEM) while staying inside
            # v7x's 64 MiB per-TensorCore budget.
            vmem_limit_bytes=48 * 1024 * 1024),
    )(hq, mask_bt1, wc, bc, wo, bo)

    alphas = alphas_bt1[:, :, 0]                                       # (B, T)
    token_num = jnp.sum(alphas, axis=-1)                               # (B,)

    # ---------------- CIF scan: native layout, time-chunked, batch-grouped -----
    G = 2 if (B >= 2 and B % 2 == 0) else 1     # v7x: one batch half per TensorCore
    BG = B // G
    tc = min(64, _round_up(T, 8))               # static unroll length per chunk
    t_pad = _round_up(T, tc)

    alphas_p = alphas_bt1
    hidden_p = hidden
    if t_pad > T:
        # zero-alpha / zero-hidden tail never fires; sliced off below
        alphas_p = jnp.pad(alphas_p, ((0, 0), (0, t_pad - T), (0, 0)))
        hidden_p = jnp.pad(hidden_p, ((0, 0), (0, t_pad - T), (0, 0)))

    fires_bt1, frames_btd = pl.pallas_call(
        functools.partial(_cif_kernel, tc=tc, threshold=float(threshold)),
        grid=(G, t_pad // tc),
        in_specs=[
            pl.BlockSpec((BG, tc, 1), lambda g, c: (g, c, 0)),
            pl.BlockSpec((BG, tc, D), lambda g, c: (g, c, 0)),
        ],
        out_specs=[
            pl.BlockSpec((BG, tc, 1), lambda g, c: (g, c, 0)),
            pl.BlockSpec((BG, tc, D), lambda g, c: (g, c, 0)),
        ],
        out_shape=[
            jax.ShapeDtypeStruct((B, t_pad, 1), jnp.float32),
            jax.ShapeDtypeStruct((B, t_pad, D), jnp.float32),
        ],
        scratch_shapes=[
            pltpu.VMEM((BG, 1), jnp.float32),   # integrate carry
            pltpu.VMEM((BG, D), jnp.float32),   # frame carry
        ],
        compiler_params=pltpu.CompilerParams(
            dimension_semantics=("parallel", "arbitrary")),
    )(alphas_p, hidden_p)

    fires = fires_bt1[:, :T, 0]                                        # (B, T) == cif_peak
    frames = frames_btd[:, :T, :]                                      # (B, T, D)

    # --------- pack fired frames to the left (fixed shape, capped at T) --------
    # TODO(synk): replace this XLA scatter with in-kernel compaction of fired rows.
    fired = fires >= threshold
    pos = jnp.where(fired, jnp.cumsum(fired.astype(jnp.int32), axis=1) - 1, T)
    bidx = jnp.broadcast_to(jnp.arange(B)[:, None], (B, T))
    buf = jnp.zeros((B, T + 1, D), frames.dtype)                       # row T = dump slot
    buf = buf.at[bidx, pos].set(frames)
    embeds_full = buf[:, :T, :]

    return embeds_full, token_num, alphas, fires


def cif_predictor_v2_forward(hidden, mask, params, *, l_order=1, r_order=1,
                             threshold=1.0, smooth_factor=1.0, noise_threshold=0.0):
    embeds_full, token_num, alphas, fires = _forward_core(
        hidden, mask, params, l_order=l_order, r_order=r_order,
        threshold=float(threshold), smooth_factor=float(smooth_factor),
        noise_threshold=float(noise_threshold))
    # Single host sync reproduces torch's dynamic output length; the jit above is
    # fixed-shape so distinct lengths never trigger recompiles.
    max_label_len = int(jnp.max(jnp.round(token_num)))
    acoustic_embeds = embeds_full[:, :max_label_len, :]
    return acoustic_embeds, token_num, alphas, fires


# --------------------------------------------------------------------------- #
# NumPy references (mirror the PyTorch code)                                    #
# --------------------------------------------------------------------------- #
def _reference_alphas(hidden, mask, params, *, l_order, r_order,
                      smooth_factor, noise_threshold):
    hidden = np.asarray(hidden, np.float64)
    mask = np.asarray(mask, np.float64)
    conv_w = np.asarray(params["conv_w"], np.float64)
    conv_b = np.asarray(params["conv_b"], np.float64)
    out_w = np.asarray(params["out_w"], np.float64)
    out_b = np.asarray(params["out_b"], np.float64)
    B, T, D = hidden.shape
    K = conv_w.shape[2]
    hp = np.pad(hidden, ((0, 0), (l_order, r_order), (0, 0)))
    conv = np.zeros((B, T, D))
    for k in range(K):
        conv += hp[:, k:k + T, :] @ conv_w[:, :, k].T
    conv = np.maximum(conv + conv_b, 0.0)
    logits = conv @ out_w.T + out_b
    alphas = 1.0 / (1.0 + np.exp(-logits))
    alphas = np.maximum(alphas * smooth_factor - noise_threshold, 0.0)
    alphas = (alphas * np.transpose(mask, (0, 2, 1)))[..., 0]
    return alphas, alphas.sum(-1)


def _reference_cif(hidden, alphas, threshold):
    hidden = np.asarray(hidden, np.float64)
    alphas = np.asarray(alphas, np.float64)
    B, T, D = hidden.shape
    integrate = np.zeros(B)
    frame = np.zeros((B, D))
    fires = np.zeros((B, T))
    frames = np.zeros((B, T, D))
    for t in range(T):
        alpha = alphas[:, t]
        dist_comp = 1.0 - integrate
        integrate = integrate + alpha
        fires[:, t] = integrate
        fire = integrate >= threshold
        integrate = np.where(fire, integrate - 1.0, integrate)
        cur = np.where(fire, dist_comp, alpha)
        rem = alpha - cur
        frame = frame + cur[:, None] * hidden[:, t, :]
        frames[:, t] = frame
        frame = np.where(fire[:, None], rem[:, None] * hidden[:, t, :], frame)
    return fires, frames


def _reference_pack(frames, fires, threshold, max_label_len):
    B, T, D = frames.shape
    out = np.zeros((B, max_label_len, D))
    for b in range(B):
        sel = frames[b][fires[b] >= threshold]
        n = min(sel.shape[0], max_label_len)
        out[b, :n] = sel[:n]
    return out


if __name__ == "__main__":
    B, T, D = 2, 16, 32
    l_order, r_order = 1, 1
    key = jax.random.PRNGKey(0)
    kh, kp = jax.random.split(key)
    hidden = jax.random.normal(kh, (B, T, D), jnp.float32)
    params = init_params(kp, D, l_order + r_order + 1)

    mask_np = np.ones((B, 1, T), np.float32)
    mask_np[1, 0, T - 3:] = 0.0                 # pad out the tail of batch element 1
    mask = jnp.asarray(mask_np)

    out = cif_predictor_v2_forward(hidden, mask, params,
                                   l_order=l_order, r_order=r_order)
    out = jax.block_until_ready(out)
    acoustic_embeds, token_num, alphas, cif_peak = out

    # Layer 1: alphas / token_num vs a pure-f64 reference of the conv path.
    # (looser tolerance because the conv matmul uses bf16 operands, f32 accumulate)
    ref_alphas, ref_token_num = _reference_alphas(
        np.asarray(hidden), mask_np, params, l_order=l_order, r_order=r_order,
        smooth_factor=1.0, noise_threshold=0.0)
    np.testing.assert_allclose(np.asarray(alphas), ref_alphas, atol=5e-3, rtol=5e-3)
    np.testing.assert_allclose(np.asarray(token_num), ref_token_num,
                               atol=2e-2, rtol=5e-3)

    # Layer 2: CIF scan + packing vs an f64 reference driven by the SAME alphas
    # (isolates the scan/packing from the bf16 conv quantization).
    ref_fires, ref_frames = _reference_cif(np.asarray(hidden),
                                           np.asarray(alphas), 1.0)
    np.testing.assert_allclose(np.asarray(cif_peak), ref_fires, atol=1e-3, rtol=1e-3)
    max_label_len = acoustic_embeds.shape[1]
    ref_acoustic = _reference_pack(ref_frames, ref_fires, 1.0, max_label_len)
    assert acoustic_embeds.shape == ref_acoustic.shape, \
        (acoustic_embeds.shape, ref_acoustic.shape)
    np.testing.assert_allclose(np.asarray(acoustic_embeds), ref_acoustic,
                               atol=1e-3, rtol=1e-3)

    print("KERNEL_OK")
</pallas_src>

<mosaic_0001>
module attributes {stable_mosaic.version = 11 : i64} {
  func.func @_alphas_kernel(%arg0: i32, %arg1: memref<1x18x32xf32, #tpu.memory_space<vmem>>, %arg2: memref<1x16x1xf32, #tpu.memory_space<vmem>>, %arg3: memref<3x32x32xbf16, #tpu.memory_space<vmem>>, %arg4: memref<1x32xf32, #tpu.memory_space<vmem>>, %arg5: memref<1x32xf32, #tpu.memory_space<vmem>>, %arg6: memref<1x1xf32, #tpu.memory_space<vmem>>, %arg7: memref<1x16x1xf32, #tpu.memory_space<vmem>>) attributes {dimension_semantics = [#tpu.dimension_semantics<parallel>], iteration_bounds = array<i64: 2>, scalar_prefetch = 0 : i64, scratch_operands = 0 : i64, tpu.core_type = #tpu.core_type<tc>, window_params = [{transform_indices = @transform_0, window_bounds = array<i64: 1, 18, 32>}, {transform_indices = @transform_1, window_bounds = array<i64: 1, 16, 1>}, {pipeline_mode = #tpu.pipeline_mode<synchronous>, transform_indices = @transform_2, window_bounds = array<i64: 3, 32, 32>}, {pipeline_mode = #tpu.pipeline_mode<synchronous>, transform_indices = @transform_3, window_bounds = array<i64: 1, 32>}, {pipeline_mode = #tpu.pipeline_mode<synchronous>, transform_indices = @transform_4, window_bounds = array<i64: 1, 32>}, {pipeline_mode = #tpu.pipeline_mode<synchronous>, transform_indices = @transform_5, window_bounds = array<i64: 1, 1>}, {transform_indices = @transform_6, window_bounds = array<i64: 1, 16, 1>}]} {
    %cst = arith.constant 0.000000e+00 : f32
    %0 = vector.broadcast %cst : f32 to vector<16x32xf32>
    %c0 = arith.constant 0 : index
    %c0_0 = arith.constant 0 : index
    %c0_1 = arith.constant 0 : index
    %1 = vector.load %arg1[%c0, %c0_0, %c0_1] : memref<1x18x32xf32, #tpu.memory_space<vmem>>, vector<1x16x32xf32>
    %2 = vector.shape_cast %1 : vector<1x16x32xf32> to vector<16x32xf32>
    %3 = arith.truncf %2 : vector<16x32xf32> to vector<16x32xbf16>
    %c0_2 = arith.constant 0 : index
    %c0_3 = arith.constant 0 : index
    %c0_4 = arith.constant 0 : index
    %4 = vector.load %arg3[%c0_2, %c0_3, %c0_4] : memref<3x32x32xbf16, #tpu.memory_space<vmem>>, vector<1x32x32xbf16>
    %5 = vector.shape_cast %4 : vector<1x32x32xbf16> to vector<32x32xbf16>
    %cst_5 = arith.constant dense<0.000000e+00> : vector<16x32xf32>
    %6 = tpu.matmul %3, %5, %cst_5 {dimension_numbers = #tpu.dot_dimension_numbers<[1], [0], [0], [1], [0, 0, 1, 1], [], []>} : vector<16x32xbf16>, vector<32x32xbf16>, vector<16x32xf32> -> vector<16x32xf32>
    %7 = arith.addf %0, %6 : vector<16x32xf32>
    %c0_6 = arith.constant 0 : index
    %c1 = arith.constant 1 : index
    %c0_7 = arith.constant 0 : index
    %8 = vector.load %arg1[%c0_6, %c1, %c0_7] : memref<1x18x32xf32, #tpu.memory_space<vmem>>, vector<1x16x32xf32>
    %9 = vector.shape_cast %8 : vector<1x16x32xf32> to vector<16x32xf32>
    %10 = arith.truncf %9 : vector<16x32xf32> to vector<16x32xbf16>
    %c1_8 = arith.constant 1 : index
    %c0_9 = arith.constant 0 : index
    %c0_10 = arith.constant 0 : index
    %11 = vector.load %arg3[%c1_8, %c0_9, %c0_10] : memref<3x32x32xbf16, #tpu.memory_space<vmem>>, vector<1x32x32xbf16>
    %12 = vector.shape_cast %11 : vector<1x32x32xbf16> to vector<32x32xbf16>
    %cst_11 = arith.constant dense<0.000000e+00> : vector<16x32xf32>
    %13 = tpu.matmul %10, %12, %cst_11 {dimension_numbers = #tpu.dot_dimension_numbers<[1], [0], [0], [1], [0, 0, 1, 1], [], []>} : vector<16x32xbf16>, vector<32x32xbf16>, vector<16x32xf32> -> vector<16x32xf32>
    %14 = arith.addf %7, %13 : vector<16x32xf32>
    %c0_12 = arith.constant 0 : index
    %c2 = arith.constant 2 : index
    %c0_13 = arith.constant 0 : index
    %15 = vector.load %arg1[%c0_12, %c2, %c0_13] : memref<1x18x32xf32, #tpu.memory_space<vmem>>, vector<1x16x32xf32>
    %16 = vector.shape_cast %15 : vector<1x16x32xf32> to vector<16x32xf32>
    %17 = arith.truncf %16 : vector<16x32xf32> to vector<16x32xbf16>
    %c2_14 = arith.constant 2 : index
    %c0_15 = arith.constant 0 : index
    %c0_16 = arith.constant 0 : index
    %18 = vector.load %arg3[%c2_14, %c0_15, %c0_16] : memref<3x32x32xbf16, #tpu.memory_space<vmem>>, vector<1x32x32xbf16>
    %19 = vector.shape_cast %18 : vector<1x32x32xbf16> to vector<32x32xbf16>
    %cst_17 = arith.constant dense<0.000000e+00> : vector<16x32xf32>
    %20 = tpu.matmul %17, %19, %cst_17 {dimension_numbers = #tpu.dot_dimension_numbers<[1], [0], [0], [1], [0, 0, 1, 1], [], []>} : vector<16x32xbf16>, vector<32x32xbf16>, vector<16x32xf32> -> vector<16x32xf32>
    %21 = arith.addf %14, %20 : vector<16x32xf32>
    %c0_18 = arith.constant 0 : index
    %c0_19 = arith.constant 0 : index
    %22 = vector.load %arg4[%c0_18, %c0_19] : memref<1x32xf32, #tpu.memory_space<vmem>>, vector<1x32xf32>
    %23 = vector.broadcast %22 : vector<1x32xf32> to vector<16x32xf32>
    %24 = arith.addf %21, %23 : vector<16x32xf32>
    %cst_20 = arith.constant 0.000000e+00 : f32
    %25 = vector.broadcast %cst_20 : f32 to vector<16x32xf32>
    %26 = arith.maximumf %24, %25 : vector<16x32xf32>
    %c0_21 = arith.constant 0 : index
    %c0_22 = arith.constant 0 : index
    %27 = vector.load %arg5[%c0_21, %c0_22] : memref<1x32xf32, #tpu.memory_space<vmem>>, vector<1x32xf32>
    %28 = vector.broadcast %27 : vector<1x32xf32> to vector<16x32xf32>
    %29 = arith.mulf %26, %28 : vector<16x32xf32>
    %cst_23 = arith.constant dense<0.000000e+00> : vector<16xf32>
    %30 = vector.multi_reduction <add>, %29, %cst_23 [1] : vector<16x32xf32> to vector<16xf32>
    %31 = vector.shape_cast %30 : vector<16xf32> to vector<16x1xf32>
    %c0_24 = arith.constant 0 : index
    %c0_25 = arith.constant 0 : index
    %32 = vector.load %arg6[%c0_24, %c0_25] : memref<1x1xf32, #tpu.memory_space<vmem>>, vector<1x1xf32>
    %33 = vector.broadcast %32 : vector<1x1xf32> to vector<16x1xf32>
    %34 = arith.addf %31, %33 : vector<16x1xf32>
    %35 = arith.negf %34 : vector<16x1xf32>
    %36 = math.exp %35 : vector<16x1xf32>
    %cst_26 = arith.constant 1.000000e+00 : f32
    %37 = vector.broadcast %cst_26 : f32 to vector<16x1xf32>
    %38 = arith.addf %37, %36 : vector<16x1xf32>
    %39 = arith.divf %37, %38 : vector<16x1xf32>
    %cst_27 = arith.constant 1.000000e+00 : f32
    %40 = vector.broadcast %cst_27 : f32 to vector<16x1xf32>
    %41 = arith.mulf %39, %40 : vector<16x1xf32>
    %cst_28 = arith.constant 0.000000e+00 : f32
    %42 = vector.broadcast %cst_28 : f32 to vector<16x1xf32>
    %43 = arith.subf %41, %42 : vector<16x1xf32>
    %cst_29 = arith.constant 0.000000e+00 : f32
    %44 = vector.broadcast %cst_29 : f32 to vector<16x1xf32>
    %45 = arith.maximumf %43, %44 : vector<16x1xf32>
    %c0_30 = arith.constant 0 : index
    %c0_31 = arith.constant 0 : index
    %c0_32 = arith.constant 0 : index
    %46 = vector.load %arg2[%c0_30, %c0_31, %c0_32] : memref<1x16x1xf32, #tpu.memory_space<vmem>>, vector<1x16x1xf32>
    %47 = vector.shape_cast %46 : vector<1x16x1xf32> to vector<16x1xf32>
    %48 = arith.mulf %45, %47 : vector<16x1xf32>
    %49 = vector.shape_cast %48 : vector<16x1xf32> to vector<1x16x1xf32>
    %c0_33 = arith.constant 0 : index
    %c0_34 = arith.constant 0 : index
    %c0_35 = arith.constant 0 : index
    %50 = vector.load %arg7[%c0_33, %c0_34, %c0_35] : memref<1x16x1xf32, #tpu.memory_space<vmem>>, vector<1x16x1xf32>
    tpu.vector_store %arg7[%c0_33, %c0_34, %c0_35], %49 {strides = array<i32>} : memref<1x16x1xf32, #tpu.memory_space<vmem>>, vector<1x16x1xf32>,
    return
  }
  func.func @transform_0(%arg0: i32) -> (i32, i32, i32) {
    %c0_i32 = arith.constant 0 : i32
    %c0_i32_0 = arith.constant 0 : i32
    %c0_i32_1 = arith.constant 0 : i32
    return %arg0, %c0_i32, %c0_i32_0 : i32, i32, i32
  }
  func.func @transform_1(%arg0: i32) -> (i32, i32, i32) {
    %c0_i32 = arith.constant 0 : i32
    %c0_i32_0 = arith.constant 0 : i32
    %c0_i32_1 = arith.constant 0 : i32
    return %arg0, %c0_i32, %c0_i32_0 : i32, i32, i32
  }
  func.func @transform_2(%arg0: i32) -> (i32, i32, i32) {
    %c0_i32 = arith.constant 0 : i32
    %c0_i32_0 = arith.constant 0 : i32
    %c0_i32_1 = arith.constant 0 : i32
    %c0_i32_2 = arith.constant 0 : i32
    return %c0_i32, %c0_i32_0, %c0_i32_1 : i32, i32, i32
  }
  func.func @transform_3(%arg0: i32) -> (i32, i32) {
    %c0_i32 = arith.constant 0 : i32
    %c0_i32_0 = arith.constant 0 : i32
    %c0_i32_1 = arith.constant 0 : i32
    return %c0_i32, %c0_i32_0 : i32, i32
  }
  func.func @transform_4(%arg0: i32) -> (i32, i32) {
    %c0_i32 = arith.constant 0 : i32
    %c0_i32_0 = arith.constant 0 : i32
    %c0_i32_1 = arith.constant 0 : i32
    return %c0_i32, %c0_i32_0 : i32, i32
  }
  func.func @transform_5(%arg0: i32) -> (i32, i32) {
    %c0_i32 = arith.constant 0 : i32
    %c0_i32_0 = arith.constant 0 : i32
    %c0_i32_1 = arith.constant 0 : i32
    return %c0_i32, %c0_i32_0 : i32, i32
  }
  func.func @transform_6(%arg0: i32) -> (i32, i32, i32) {
    %c0_i32 = arith.constant 0 : i32
    %c0_i32_0 = arith.constant 0 : i32
    %c0_i32_1 = arith.constant 0 : i32
    return %arg0, %c0_i32, %c0_i32_0 : i32, i32, i32
  }
}

module attributes {stable_mosaic.version = 11 : i64} {
  func.func @_cif_kernel(%arg0: i32, %arg1: i32, %arg2: memref<1x16x1xf32, #tpu.memory_space<vmem>>, %arg3: memref<1x16x32xf32, #tpu.memory_space<vmem>>, %arg4: memref<1x16x1xf32, #tpu.memory_space<vmem>>, %arg5: memref<1x16x32xf32, #tpu.memory_space<vmem>>, %arg6: memref<1x1xf32, #tpu.memory_space<vmem>>, %arg7: memref<1x32xf32, #tpu.memory_space<vmem>>) attributes {dimension_semantics = [#tpu.dimension_semantics<parallel>, #tpu.dimension_semantics<arbitrary>], iteration_bounds = array<i64: 2, 1>, scalar_prefetch = 0 : i64, scratch_operands = 2 : i64, tpu.core_type = #tpu.core_type<tc>, window_params = [{transform_indices = @transform_0, window_bounds = array<i64: 1, 16, 1>}, {transform_indices = @transform_1, window_bounds = array<i64: 1, 16, 32>}, {transform_indices = @transform_2, window_bounds = array<i64: 1, 16, 1>}, {transform_indices = @transform_3, window_bounds = array<i64: 1, 16, 32>}]} {
    %c0_i32 = arith.constant 0 : i32
    %0 = arith.cmpi eq, %arg1, %c0_i32 : i32
    %1 = arith.extui %0 : i1 to i32
    %c0_i32_0 = arith.constant 0 : i32
    %2 = arith.cmpi ne, %1, %c0_i32_0 : i32
    scf.if %2 {
      %cst_232 = arith.constant 0.000000e+00 : f32
      %455 = vector.broadcast %cst_232 : f32 to vector<1x1xf32>
      %c0_233 = arith.constant 0 : index
      %c0_234 = arith.constant 0 : index
      %456 = vector.load %arg6[%c0_233, %c0_234] : memref<1x1xf32, #tpu.memory_space<vmem>>, vector<1x1xf32>
      tpu.vector_store %arg6[%c0_233, %c0_234], %455 {strides = array<i32>} : memref<1x1xf32, #tpu.memory_space<vmem>>, vector<1x1xf32>,
      %cst_235 = arith.constant 0.000000e+00 : f32
      %457 = vector.broadcast %cst_235 : f32 to vector<1x32xf32>
      %c0_236 = arith.constant 0 : index
      %c0_237 = arith.constant 0 : index
      %458 = vector.load %arg7[%c0_236, %c0_237] : memref<1x32xf32, #tpu.memory_space<vmem>>, vector<1x32xf32>
      tpu.vector_store %arg7[%c0_236, %c0_237], %457 {strides = array<i32>} : memref<1x32xf32, #tpu.memory_space<vmem>>, vector<1x32xf32>,
    } else {
    }
    %c0 = arith.constant 0 : index
    %c0_1 = arith.constant 0 : index
    %3 = vector.load %arg6[%c0, %c0_1] : memref<1x1xf32, #tpu.memory_space<vmem>>, vector<1x1xf32>
    %c0_2 = arith.constant 0 : index
    %c0_3 = arith.constant 0 : index
    %4 = vector.load %arg7[%c0_2, %c0_3] : memref<1x32xf32, #tpu.memory_space<vmem>>, vector<1x32xf32>
    %c0_4 = arith.constant 0 : index
    %c0_5 = arith.constant 0 : index
    %c0_6 = arith.constant 0 : index
    %5 = vector.load %arg2[%c0_4, %c0_5, %c0_6] : memref<1x16x1xf32, #tpu.memory_space<vmem>>, vector<1x1x1xf32>
    %6 = vector.shape_cast %5 : vector<1x1x1xf32> to vector<1x1xf32>
    %c0_7 = arith.constant 0 : index
    %c0_8 = arith.constant 0 : index
    %c0_9 = arith.constant 0 : index
    %7 = vector.load %arg3[%c0_7, %c0_8, %c0_9] : memref<1x16x32xf32, #tpu.memory_space<vmem>>, vector<1x1x32xf32>
    %8 = vector.shape_cast %7 : vector<1x1x32xf32> to vector<1x32xf32>
    %cst = arith.constant 1.000000e+00 : f32
    %9 = vector.broadcast %cst : f32 to vector<1x1xf32>
    %10 = arith.subf %9, %3 : vector<1x1xf32>
    %11 = arith.addf %3, %6 : vector<1x1xf32>
    %c0_10 = arith.constant 0 : index
    %c0_11 = arith.constant 0 : index
    %c0_12 = arith.constant 0 : index
    %12 = vector.load %arg4[%c0_10, %c0_11, %c0_12] : memref<1x16x1xf32, #tpu.memory_space<vmem>>, vector<1x1x1xf32>
    %13 = vector.shape_cast %12 : vector<1x1x1xf32> to vector<1x1xf32>
    %14 = vector.shape_cast %11 : vector<1x1xf32> to vector<1x1x1xf32>
    tpu.vector_store %arg4[%c0_10, %c0_11, %c0_12], %14 {strides = array<i32>} : memref<1x16x1xf32, #tpu.memory_space<vmem>>, vector<1x1x1xf32>,
    %cst_13 = arith.constant 1.000000e+00 : f32
    %15 = vector.broadcast %cst_13 : f32 to vector<1x1xf32>
    %16 = arith.cmpf oge, %11, %15 : vector<1x1xf32>
    %17 = arith.select %16, %10, %6 : vector<1x1xi1>, vector<1x1xf32>
    %18 = arith.subf %6, %17 : vector<1x1xf32>
    %19 = vector.broadcast %17 : vector<1x1xf32> to vector<1x32xf32>
    %20 = arith.mulf %19, %8 : vector<1x32xf32>
    %21 = arith.addf %4, %20 : vector<1x32xf32>
    %c0_14 = arith.constant 0 : index
    %c0_15 = arith.constant 0 : index
    %c0_16 = arith.constant 0 : index
    %22 = vector.load %arg5[%c0_14, %c0_15, %c0_16] : memref<1x16x32xf32, #tpu.memory_space<vmem>>, vector<1x1x32xf32>
    %23 = vector.shape_cast %22 : vector<1x1x32xf32> to vector<1x32xf32>
    %24 = vector.shape_cast %21 : vector<1x32xf32> to vector<1x1x32xf32>
    tpu.vector_store %arg5[%c0_14, %c0_15, %c0_16], %24 {strides = array<i32>} : memref<1x16x32xf32, #tpu.memory_space<vmem>>, vector<1x1x32xf32>,
    %25 = vector.broadcast %18 : vector<1x1xf32> to vector<1x32xf32>
    %26 = arith.mulf %25, %8 : vector<1x32xf32>
    %27 = vector.shape_cast %16 : vector<1x1xi1> to vector<1x1xi1>
    %28 = vector.broadcast %27 : vector<1x1xi1> to vector<1x32xi1>
    %29 = arith.select %28, %26, %21 : vector<1x32xi1>, vector<1x32xf32>
    %cst_17 = arith.constant 1.000000e+00 : f32
    %30 = vector.broadcast %cst_17 : f32 to vector<1x1xf32>
    %31 = arith.subf %11, %30 : vector<1x1xf32>
    %32 = arith.select %16, %31, %11 : vector<1x1xi1>, vector<1x1xf32>
    %c0_18 = arith.constant 0 : index
    %c1 = arith.constant 1 : index
    %c0_19 = arith.constant 0 : index
    %33 = vector.load %arg2[%c0_18, %c1, %c0_19] : memref<1x16x1xf32, #tpu.memory_space<vmem>>, vector<1x1x1xf32>
    %34 = vector.shape_cast %33 : vector<1x1x1xf32> to vector<1x1xf32>
    %c0_20 = arith.constant 0 : index
    %c1_21 = arith.constant 1 : index
    %c0_22 = arith.constant 0 : index
    %35 = vector.load %arg3[%c0_20, %c1_21, %c0_22] : memref<1x16x32xf32, #tpu.memory_space<vmem>>, vector<1x1x32xf32>
    %36 = vector.shape_cast %35 : vector<1x1x32xf32> to vector<1x32xf32>
    %cst_23 = arith.constant 1.000000e+00 : f32
    %37 = vector.broadcast %cst_23 : f32 to vector<1x1xf32>
    %38 = arith.subf %37, %32 : vector<1x1xf32>
    %39 = arith.addf %32, %34 : vector<1x1xf32>
    %c0_24 = arith.constant 0 : index
    %c1_25 = arith.constant 1 : index
    %c0_26 = arith.constant 0 : index
    %40 = vector.load %arg4[%c0_24, %c1_25, %c0_26] : memref<1x16x1xf32, #tpu.memory_space<vmem>>, vector<1x1x1xf32>
    %41 = vector.shape_cast %40 : vector<1x1x1xf32> to vector<1x1xf32>
    %42 = vector.shape_cast %39 : vector<1x1xf32> to vector<1x1x1xf32>
    tpu.vector_store %arg4[%c0_24, %c1_25, %c0_26], %42 {strides = array<i32>} : memref<1x16x1xf32, #tpu.memory_space<vmem>>, vector<1x1x1xf32>,
    %cst_27 = arith.constant 1.000000e+00 : f32
    %43 = vector.broadcast %cst_27 : f32 to vector<1x1xf32>
    %44 = arith.cmpf oge, %39, %43 : vector<1x1xf32>
    %45 = arith.select %44, %38, %34 : vector<1x1xi1>, vector<1x1xf32>
    %46 = arith.subf %34, %45 : vector<1x1xf32>
    %47 = vector.broadcast %45 : vector<1x1xf32> to vector<1x32xf32>
    %48 = arith.mulf %47, %36 : vector<1x32xf32>
    %49 = arith.addf %29, %48 : vector<1x32xf32>
    %c0_28 = arith.constant 0 : index
    %c1_29 = arith.constant 1 : index
    %c0_30 = arith.constant 0 : index
    %50 = vector.load %arg5[%c0_28, %c1_29, %c0_30] : memref<1x16x32xf32, #tpu.memory_space<vmem>>, vector<1x1x32xf32>
    %51 = vector.shape_cast %50 : vector<1x1x32xf32> to vector<1x32xf32>
    %52 = vector.shape_cast %49 : vector<1x32xf32> to vector<1x1x32xf32>
    tpu.vector_store %arg5[%c0_28, %c1_29, %c0_30], %52 {strides = array<i32>} : memref<1x16x32xf32, #tpu.memory_space<vmem>>, vector<1x1x32xf32>,
    %53 = vector.broadcast %46 : vector<1x1xf32> to vector<1x32xf32>
    %54 = arith.mulf %53, %36 : vector<1x32xf32>
    %55 = vector.shape_cast %44 : vector<1x1xi1> to vector<1x1xi1>
    %56 = vector.broadcast %55 : vector<1x1xi1> to vector<1x32xi1>
    %57 = arith.select %56, %54, %49 : vector<1x32xi1>, vector<1x32xf32>
    %cst_31 = arith.constant 1.000000e+00 : f32
    %58 = vector.broadcast %cst_31 : f32 to vector<1x1xf32>
    %59 = arith.subf %39, %58 : vector<1x1xf32>
    %60 = arith.select %44, %59, %39 : vector<1x1xi1>, vector<1x1xf32>
    %c0_32 = arith.constant 0 : index
    %c2 = arith.constant 2 : index
    %c0_33 = arith.constant 0 : index
    %61 = vector.load %arg2[%c0_32, %c2, %c0_33] : memref<1x16x1xf32, #tpu.memory_space<vmem>>, vector<1x1x1xf32>
    %62 = vector.shape_cast %61 : vector<1x1x1xf32> to vector<1x1xf32>
    %c0_34 = arith.constant 0 : index
    %c2_35 = arith.constant 2 : index
    %c0_36 = arith.constant 0 : index
    %63 = vector.load %arg3[%c0_34, %c2_35, %c0_36] : memref<1x16x32xf32, #tpu.memory_space<vmem>>, vector<1x1x32xf32>
    %64 = vector.shape_cast %63 : vector<1x1x32xf32> to vector<1x32xf32>
    %cst_37 = arith.constant 1.000000e+00 : f32
    %65 = vector.broadcast %cst_37 : f32 to vector<1x1xf32>
    %66 = arith.subf %65, %60 : vector<1x1xf32>
    %67 = arith.addf %60, %62 : vector<1x1xf32>
    %c0_38 = arith.constant 0 : index
    %c2_39 = arith.constant 2 : index
    %c0_40 = arith.constant 0 : index
    %68 = vector.load %arg4[%c0_38, %c2_39, %c0_40] : memref<1x16x1xf32, #tpu.memory_space<vmem>>, vector<1x1x1xf32>
    %69 = vector.shape_cast %68 : vector<1x1x1xf32> to vector<1x1xf32>
    %70 = vector.shape_cast %67 : vector<1x1xf32> to vector<1x1x1xf32>
    tpu.vector_store %arg4[%c0_38, %c2_39, %c0_40], %70 {strides = array<i32>} : memref<1x16x1xf32, #tpu.memory_space<vmem>>, vector<1x1x1xf32>,
    %cst_41 = arith.constant 1.000000e+00 : f32
    %71 = vector.broadcast %cst_41 : f32 to vector<1x1xf32>
    %72 = arith.cmpf oge, %67, %71 : vector<1x1xf32>
    %73 = arith.select %72, %66, %62 : vector<1x1xi1>, vector<1x1xf32>
    %74 = arith.subf %62, %73 : vector<1x1xf32>
    %75 = vector.broadcast %73 : vector<1x1xf32> to vector<1x32xf32>
    %76 = arith.mulf %75, %64 : vector<1x32xf32>
    %77 = arith.addf %57, %76 : vector<1x32xf32>
    %c0_42 = arith.constant 0 : index
    %c2_43 = arith.constant 2 : index
    %c0_44 = arith.constant 0 : index
    %78 = vector.load %arg5[%c0_42, %c2_43, %c0_44] : memref<1x16x32xf32, #tpu.memory_space<vmem>>, vector<1x1x32xf32>
    %79 = vector.shape_cast %78 : vector<1x1x32xf32> to vector<1x32xf32>
    %80 = vector.shape_cast %77 : vector<1x32xf32> to vector<1x1x32xf32>
    tpu.vector_store %arg5[%c0_42, %c2_43, %c0_44], %80 {strides = array<i32>} : memref<1x16x32xf32, #tpu.memory_space<vmem>>, vector<1x1x32xf32>,
    %81 = vector.broadcast %74 : vector<1x1xf32> to vector<1x32xf32>
    %82 = arith.mulf %81, %64 : vector<1x32xf32>
    %83 = vector.shape_cast %72 : vector<1x1xi1> to vector<1x1xi1>
    %84 = vector.broadcast %83 : vector<1x1xi1> to vector<1x32xi1>
    %85 = arith.select %84, %82, %77 : vector<1x32xi1>, vector<1x32xf32>
    %cst_45 = arith.constant 1.000000e+00 : f32
    %86 = vector.broadcast %cst_45 : f32 to vector<1x1xf32>
    %87 = arith.subf %67, %86 : vector<1x1xf32>
    %88 = arith.select %72, %87, %67 : vector<1x1xi1>, vector<1x1xf32>
    %c0_46 = arith.constant 0 : index
    %c3 = arith.constant 3 : index
    %c0_47 = arith.constant 0 : index
    %89 = vector.load %arg2[%c0_46, %c3, %c0_47] : memref<1x16x1xf32, #tpu.memory_space<vmem>>, vector<1x1x1xf32>
    %90 = vector.shape_cast %89 : vector<1x1x1xf32> to vector<1x1xf32>
    %c0_48 = arith.constant 0 : index
    %c3_49 = arith.constant 3 : index
    %c0_50 = arith.constant 0 : index
    %91 = vector.load %arg3[%c0_48, %c3_49, %c0_50] : memref<1x16x32xf32, #tpu.memory_space<vmem>>, vector<1x1x32xf32>
    %92 = vector.shape_cast %91 : vector<1x1x32xf32> to vector<1x32xf32>
    %cst_51 = arith.constant 1.000000e+00 : f32
    %93 = vector.broadcast %cst_51 : f32 to vector<1x1xf32>
    %94 = arith.subf %93, %88 : vector<1x1xf32>
    %95 = arith.addf %88, %90 : vector<1x1xf32>
    %c0_52 = arith.constant 0 : index
    %c3_53 = arith.constant 3 : index
    %c0_54 = arith.constant 0 : index
    %96 = vector.load %arg4[%c0_52, %c3_53, %c0_54] : memref<1x16x1xf32, #tpu.memory_space<vmem>>, vector<1x1x1xf32>
    %97 = vector.shape_cast %96 : vector<1x1x1xf32> to vector<1x1xf32>
    %98 = vector.shape_cast %95 : vector<1x1xf32> to vector<1x1x1xf32>
    tpu.vector_store %arg4[%c0_52, %c3_53, %c0_54], %98 {strides = array<i32>} : memref<1x16x1xf32, #tpu.memory_space<vmem>>, vector<1x1x1xf32>,
    %cst_55 = arith.constant 1.000000e+00 : f32
    %99 = vector.broadcast %cst_55 : f32 to vector<1x1xf32>
    %100 = arith.cmpf oge, %95, %99 : vector<1x1xf32>
    %101 = arith.select %100, %94, %90 : vector<1x1xi1>, vector<1x1xf32>
    %102 = arith.subf %90, %101 : vector<1x1xf32>
    %103 = vector.broadcast %101 : vector<1x1xf32> to vector<1x32xf32>
    %104 = arith.mulf %103, %92 : vector<1x32xf32>
    %105 = arith.addf %85, %104 : vector<1x32xf32>
    %c0_56 = arith.constant 0 : index
    %c3_57 = arith.constant 3 : index
    %c0_58 = arith.constant 0 : index
    %106 = vector.load %arg5[%c0_56, %c3_57, %c0_58] : memref<1x16x32xf32, #tpu.memory_space<vmem>>, vector<1x1x32xf32>
    %107 = vector.shape_cast %106 : vector<1x1x32xf32> to vector<1x32xf32>
    %108 = vector.shape_cast %105 : vector<1x32xf32> to vector<1x1x32xf32>
    tpu.vector_store %arg5[%c0_56, %c3_57, %c0_58], %108 {strides = array<i32>} : memref<1x16x32xf32, #tpu.memory_space<vmem>>, vector<1x1x32xf32>,
    %109 = vector.broadcast %102 : vector<1x1xf32> to vector<1x32xf32>
    %110 = arith.mulf %109, %92 : vector<1x32xf32>
    %111 = vector.shape_cast %100 : vector<1x1xi1> to vector<1x1xi1>
    %112 = vector.broadcast %111 : vector<1x1xi1> to vector<1x32xi1>
    %113 = arith.select %112, %110, %105 : vector<1x32xi1>, vector<1x32xf32>
    %cst_59 = arith.constant 1.000000e+00 : f32
    %114 = vector.broadcast %cst_59 : f32 to vector<1x1xf32>
    %115 = arith.subf %95, %114 : vector<1x1xf32>
    %116 = arith.select %100, %115, %95 : vector<1x1xi1>, vector<1x1xf32>
    %c0_60 = arith.constant 0 : index
    %c4 = arith.constant 4 : index
    %c0_61 = arith.constant 0 : index
    %117 = vector.load %arg2[%c0_60, %c4, %c0_61] : memref<1x16x1xf32, #tpu.memory_space<vmem>>, vector<1x1x1xf32>
    %118 = vector.shape_cast %117 : vector<1x1x1xf32> to vector<1x1xf32>
    %c0_62 = arith.constant 0 : index
    %c4_63 = arith.constant 4 : index
    %c0_64 = arith.constant 0 : index
    %119 = vector.load %arg3[%c0_62, %c4_63, %c0_64] : memref<1x16x32xf32, #tpu.memory_space<vmem>>, vector<1x1x32xf32>
    %120 = vector.shape_cast %119 : vector<1x1x32xf32> to vector<1x32xf32>
    %cst_65 = arith.constant 1.000000e+00 : f32
    %121 = vector.broadcast %cst_65 : f32 to vector<1x1xf32>
    %122 = arith.subf %121, %116 : vector<1x1xf32>
    %123 = arith.addf %116, %118 : vector<1x1xf32>
    %c0_66 = arith.constant 0 : index
    %c4_67 = arith.constant 4 : index
    %c0_68 = arith.constant 0 : index
    %124 = vector.load %arg4[%c0_66, %c4_67, %c0_68] : memref<1x16x1xf32, #tpu.memory_space<vmem>>, vector<1x1x1xf32>
    %125 = vector.shape_cast %124 : vector<1x1x1xf32> to vector<1x1xf32>
    %126 = vector.shape_cast %123 : vector<1x1xf32> to vector<1x1x1xf32>
    tpu.vector_store %arg4[%c0_66, %c4_67, %c0_68], %126 {strides = array<i32>} : memref<1x16x1xf32, #tpu.memory_space<vmem>>, vector<1x1x1xf32>,
    %cst_69 = arith.constant 1.000000e+00 : f32
    %127 = vector.broadcast %cst_69 : f32 to vector<1x1xf32>
    %128 = arith.cmpf oge, %123, %127 : vector<1x1xf32>
    %129 = arith.select %128, %122, %118 : vector<1x1xi1>, vector<1x1xf32>
    %130 = arith.subf %118, %129 : vector<1x1xf32>
    %131 = vector.broadcast %129 : vector<1x1xf32> to vector<1x32xf32>
    %132 = arith.mulf %131, %120 : vector<1x32xf32>
    %133 = arith.addf %113, %132 : vector<1x32xf32>
    %c0_70 = arith.constant 0 : index
    %c4_71 = arith.constant 4 : index
    %c0_72 = arith.constant 0 : index
    %134 = vector.load %arg5[%c0_70, %c4_71, %c0_72] : memref<1x16x32xf32, #tpu.memory_space<vmem>>, vector<1x1x32xf32>
    %135 = vector.shape_cast %134 : vector<1x1x32xf32> to vector<1x32xf32>
    %136 = vector.shape_cast %133 : vector<1x32xf32> to vector<1x1x32xf32>
    tpu.vector_store %arg5[%c0_70, %c4_71, %c0_72], %136 {strides = array<i32>} : memref<1x16x32xf32, #tpu.memory_space<vmem>>, vector<1x1x32xf32>,
    %137 = vector.broadcast %130 : vector<1x1xf32> to vector<1x32xf32>
    %138 = arith.mulf %137, %120 : vector<1x32xf32>
    %139 = vector.shape_cast %128 : vector<1x1xi1> to vector<1x1xi1>
    %140 = vector.broadcast %139 : vector<1x1xi1> to vector<1x32xi1>
    %141 = arith.select %140, %138, %133 : vector<1x32xi1>, vector<1x32xf32>
    %cst_73 = arith.constant 1.000000e+00 : f32
    %142 = vector.broadcast %cst_73 : f32 to vector<1x1xf32>
    %143 = arith.subf %123, %142 : vector<1x1xf32>
    %144 = arith.select %128, %143, %123 : vector<1x1xi1>, vector<1x1xf32>
    %c0_74 = arith.constant 0 : index
    %c5 = arith.constant 5 : index
    %c0_75 = arith.constant 0 : index
    %145 = vector.load %arg2[%c0_74, %c5, %c0_75] : memref<1x16x1xf32, #tpu.memory_space<vmem>>, vector<1x1x1xf32>
    %146 = vector.shape_cast %145 : vector<1x1x1xf32> to vector<1x1xf32>
    %c0_76 = arith.constant 0 : index
    %c5_77 = arith.constant 5 : index
    %c0_78 = arith.constant 0 : index
    %147 = vector.load %arg3[%c0_76, %c5_77, %c0_78] : memref<1x16x32xf32, #tpu.memory_space<vmem>>, vector<1x1x32xf32>
    %148 = vector.shape_cast %147 : vector<1x1x32xf32> to vector<1x32xf32>
    %cst_79 = arith.constant 1.000000e+00 : f32
    %149 = vector.broadcast %cst_79 : f32 to vector<1x1xf32>
    %150 = arith.subf %149, %144 : vector<1x1xf32>
    %151 = arith.addf %144, %146 : vector<1x1xf32>
    %c0_80 = arith.constant 0 : index
    %c5_81 = arith.constant 5 : index
    %c0_82 = arith.constant 0 : index
    %152 = vector.load %arg4[%c0_80, %c5_81, %c0_82] : memref<1x16x1xf32, #tpu.memory_space<vmem>>, vector<1x1x1xf32>
    %153 = vector.shape_cast %152 : vector<1x1x1xf32> to vector<1x1xf32>
    %154 = vector.shape_cast %151 : vector<1x1xf32> to vector<1x1x1xf32>
    tpu.vector_store %arg4[%c0_80, %c5_81, %c0_82], %154 {strides = array<i32>} : memref<1x16x1xf32, #tpu.memory_space<vmem>>, vector<1x1x1xf32>,
    %cst_83 = arith.constant 1.000000e+00 : f32
    %155 = vector.broadcast %cst_83 : f32 to vector<1x1xf32>
    %156 = arith.cmpf oge, %151, %155 : vector<1x1xf32>
    %157 = arith.select %156, %150, %146 : vector<1x1xi1>, vector<1x1xf32>
    %158 = arith.subf %146, %157 : vector<1x1xf32>
    %159 = vector.broadcast %157 : vector<1x1xf32> to vector<1x32xf32>
    %160 = arith.mulf %159, %148 : vector<1x32xf32>
    %161 = arith.addf %141, %160 : vector<1x32xf32>
    %c0_84 = arith.constant 0 : index
    %c5_85 = arith.constant 5 : index
    %c0_86 = arith.constant 0 : index
    %162 = vector.load %arg5[%c0_84, %c5_85, %c0_86] : memref<1x16x32xf32, #tpu.memory_space<vmem>>, vector<1x1x32xf32>
    %163 = vector.shape_cast %162 : vector<1x1x32xf32> to vector<1x32xf32>
    %164 = vector.shape_cast %161 : vector<1x32xf32> to vector<1x1x32xf32>
    tpu.vector_store %arg5[%c0_84, %c5_85, %c0_86], %164 {strides = array<i32>} : memref<1x16x32xf32, #tpu.memory_space<vmem>>, vector<1x1x32xf32>,
    %165 = vector.broadcast %158 : vector<1x1xf32> to vector<1x32xf32>
    %166 = arith.mulf %165, %148 : vector<1x32xf32>
    %167 = vector.shape_cast %156 : vector<1x1xi1> to vector<1x1xi1>
    %168 = vector.broadcast %167 : vector<1x1xi1> to vector<1x32xi1>
    %169 = arith.select %168, %166, %161 : vector<1x32xi1>, vector<1x32xf32>
    %cst_87 = arith.constant 1.000000e+00 : f32
    %170 = vector.broadcast %cst_87 : f32 to vector<1x1xf32>
    %171 = arith.subf %151, %170 : vector<1x1xf32>
    %172 = arith.select %156, %171, %151 : vector<1x1xi1>, vector<1x1xf32>
    %c0_88 = arith.constant 0 : index
    %c6 = arith.constant 6 : index
    %c0_89 = arith.constant 0 : index
    %173 = vector.load %arg2[%c0_88, %c6, %c0_89] : memref<1x16x1xf32, #tpu.memory_space<vmem>>, vector<1x1x1xf32>
    %174 = vector.shape_cast %173 : vector<1x1x1xf32> to vector<1x1xf32>
    %c0_90 = arith.constant 0 : index
    %c6_91 = arith.constant 6 : index
    %c0_92 = arith.constant 0 : index
    %175 = vector.load %arg3[%c0_90, %c6_91, %c0_92] : memref<1x16x32xf32, #tpu.memory_space<vmem>>, vector<1x1x32xf32>
    %176 = vector.shape_cast %175 : vector<1x1x32xf32> to vector<1x32xf32>
    %cst_93 = arith.constant 1.000000e+00 : f32
    %177 = vector.broadcast %cst_93 : f32 to vector<1x1xf32>
    %178 = arith.subf %177, %172 : vector<1x1xf32>
    %179 = arith.addf %172, %174 : vector<1x1xf32>
    %c0_94 = arith.constant 0 : index
    %c6_95 = arith.constant 6 : index
    %c0_96 = arith.constant 0 : index
    %180 = vector.load %arg4[%c0_94, %c6_95, %c0_96] : memref<1x16x1xf32, #tpu.memory_space<vmem>>, vector<1x1x1xf32>
    %181 = vector.shape_cast %180 : vector<1x1x1xf32> to vector<1x1xf32>
    %182 = vector.shape_cast %179 : vector<1x1xf32> to vector<1x1x1xf32>
    tpu.vector_store %arg4[%c0_94, %c6_95, %c0_96], %182 {strides = array<i32>} : memref<1x16x1xf32, #tpu.memory_space<vmem>>, vector<1x1x1xf32>,
    %cst_97 = arith.constant 1.000000e+00 : f32
    %183 = vector.broadcast %cst_97 : f32 to vector<1x1xf32>
    %184 = arith.cmpf oge, %179, %183 : vector<1x1xf32>
    %185 = arith.select %184, %178, %174 : vector<1x1xi1>, vector<1x1xf32>
    %186 = arith.subf %174, %185 : vector<1x1xf32>
    %187 = vector.broadcast %185 : vector<1x1xf32> to vector<1x32xf32>
    %188 = arith.mulf %187, %176 : vector<1x32xf32>
    %189 = arith.addf %169, %188 : vector<1x32xf32>
    %c0_98 = arith.constant 0 : index
    %c6_99 = arith.constant 6 : index
    %c0_100 = arith.constant 0 : index
    %190 = vector.load %arg5[%c0_98, %c6_99, %c0_100] : memref<1x16x32xf32, #tpu.memory_space<vmem>>, vector<1x1x32xf32>
    %191 = vector.shape_cast %190 : vector<1x1x32xf32> to vector<1x32xf32>
    %192 = vector.shape_cast %189 : vector<1x32xf32> to vector<1x1x32xf32>
    tpu.vector_store %arg5[%c0_98, %c6_99, %c0_100], %192 {strides = array<i32>} : memref<1x16x32xf32, #tpu.memory_space<vmem>>, vector<1x1x32xf32>,
    %193 = vector.broadcast %186 : vector<1x1xf32> to vector<1x32xf32>
    %194 = arith.mulf %193, %176 : vector<1x32xf32>
    %195 = vector.shape_cast %184 : vector<1x1xi1> to vector<1x1xi1>
    %196 = vector.broadcast %195 : vector<1x1xi1> to vector<1x32xi1>
    %197 = arith.select %196, %194, %189 : vector<1x32xi1>, vector<1x32xf32>
    %cst_101 = arith.constant 1.000000e+00 : f32
    %198 = vector.broadcast %cst_101 : f32 to vector<1x1xf32>
    %199 = arith.subf %179, %198 : vector<1x1xf32>
    %200 = arith.select %184, %199, %179 : vector<1x1xi1>, vector<1x1xf32>
    %c0_102 = arith.constant 0 : index
    %c7 = arith.constant 7 : index
    %c0_103 = arith.constant 0 : index
    %201 = vector.load %arg2[%c0_102, %c7, %c0_103] : memref<1x16x1xf32, #tpu.memory_space<vmem>>, vector<1x1x1xf32>
    %202 = vector.shape_cast %201 : vector<1x1x1xf32> to vector<1x1xf32>
    %c0_104 = arith.constant 0 : index
    %c7_105 = arith.constant 7 : index
    %c0_106 = arith.constant 0 : index
    %203 = vector.load %arg3[%c0_104, %c7_105, %c0_106] : memref<1x16x32xf32, #tpu.memory_space<vmem>>, vector<1x1x32xf32>
    %204 = vector.shape_cast %203 : vector<1x1x32xf32> to vector<1x32xf32>
    %cst_107 = arith.constant 1.000000e+00 : f32
    %205 = vector.broadcast %cst_107 : f32 to vector<1x1xf32>
    %206 = arith.subf %205, %200 : vector<1x1xf32>
    %207 = arith.addf %200, %202 : vector<1x1xf32>
    %c0_108 = arith.constant 0 : index
    %c7_109 = arith.constant 7 : index
    %c0_110 = arith.constant 0 : index
    %208 = vector.load %arg4[%c0_108, %c7_109, %c0_110] : memref<1x16x1xf32, #tpu.memory_space<vmem>>, vector<1x1x1xf32>
    %209 = vector.shape_cast %208 : vector<1x1x1xf32> to vector<1x1xf32>
    %210 = vector.shape_cast %207 : vector<1x1xf32> to vector<1x1x1xf32>
    tpu.vector_store %arg4[%c0_108, %c7_109, %c0_110], %210 {strides = array<i32>} : memref<1x16x1xf32, #tpu.memory_space<vmem>>, vector<1x1x1xf32>,
    %cst_111 = arith.constant 1.000000e+00 : f32
    %211 = vector.broadcast %cst_111 : f32 to vector<1x1xf32>
    %212 = arith.cmpf oge, %207, %211 : vector<1x1xf32>
    %213 = arith.select %212, %206, %202 : vector<1x1xi1>, vector<1x1xf32>
    %214 = arith.subf %202, %213 : vector<1x1xf32>
    %215 = vector.broadcast %213 : vector<1x1xf32> to vector<1x32xf32>
    %216 = arith.mulf %215, %204 : vector<1x32xf32>
    %217 = arith.addf %197, %216 : vector<1x32xf32>
    %c0_112 = arith.constant 0 : index
    %c7_113 = arith.constant 7 : index
    %c0_114 = arith.constant 0 : index
    %218 = vector.load %arg5[%c0_112, %c7_113, %c0_114] : memref<1x16x32xf32, #tpu.memory_space<vmem>>, vector<1x1x32xf32>
    %219 = vector.shape_cast %218 : vector<1x1x32xf32> to vector<1x32xf32>
    %220 = vector.shape_cast %217 : vector<1x32xf32> to vector<1x1x32xf32>
    tpu.vector_store %arg5[%c0_112, %c7_113, %c0_114], %220 {strides = array<i32>} : memref<1x16x32xf32, #tpu.memory_space<vmem>>, vector<1x1x32xf32>,
    %221 = vector.broadcast %214 : vector<1x1xf32> to vector<1x32xf32>
    %222 = arith.mulf %221, %204 : vector<1x32xf32>
    %223 = vector.shape_cast %212 : vector<1x1xi1> to vector<1x1xi1>
    %224 = vector.broadcast %223 : vector<1x1xi1> to vector<1x32xi1>
    %225 = arith.select %224, %222, %217 : vector<1x32xi1>, vector<1x32xf32>
    %cst_115 = arith.constant 1.000000e+00 : f32
    %226 = vector.broadcast %cst_115 : f32 to vector<1x1xf32>
    %227 = arith.subf %207, %226 : vector<1x1xf32>
    %228 = arith.select %212, %227, %207 : vector<1x1xi1>, vector<1x1xf32>
    %c0_116 = arith.constant 0 : index
    %c8 = arith.constant 8 : index
    %c0_117 = arith.constant 0 : index
    %229 = vector.load %arg2[%c0_116, %c8, %c0_117] : memref<1x16x1xf32, #tpu.memory_space<vmem>>, vector<1x1x1xf32>
    %230 = vector.shape_cast %229 : vector<1x1x1xf32> to vector<1x1xf32>
    %c0_118 = arith.constant 0 : index
    %c8_119 = arith.constant 8 : index
    %c0_120 = arith.constant 0 : index
    %231 = vector.load %arg3[%c0_118, %c8_119, %c0_120] : memref<1x16x32xf32, #tpu.memory_space<vmem>>, vector<1x1x32xf32>
    %232 = vector.shape_cast %231 : vector<1x1x32xf32> to vector<1x32xf32>
    %cst_121 = arith.constant 1.000000e+00 : f32
    %233 = vector.broadcast %cst_121 : f32 to vector<1x1xf32>
    %234 = arith.subf %233, %228 : vector<1x1xf32>
    %235 = arith.addf %228, %230 : vector<1x1xf32>
    %c0_122 = arith.constant 0 : index
    %c8_123 = arith.constant 8 : index
    %c0_124 = arith.constant 0 : index
    %236 = vector.load %arg4[%c0_122, %c8_123, %c0_124] : memref<1x16x1xf32, #tpu.memory_space<vmem>>, vector<1x1x1xf32>
    %237 = vector.shape_cast %236 : vector<1x1x1xf32> to vector<1x1xf32>
    %238 = vector.shape_cast %235 : vector<1x1xf32> to vector<1x1x1xf32>
    tpu.vector_store %arg4[%c0_122, %c8_123, %c0_124], %238 {strides = array<i32>} : memref<1x16x1xf32, #tpu.memory_space<vmem>>, vector<1x1x1xf32>,
    %cst_125 = arith.constant 1.000000e+00 : f32
    %239 = vector.broadcast %cst_125 : f32 to vector<1x1xf32>
    %240 = arith.cmpf oge, %235, %239 : vector<1x1xf32>
    %241 = arith.select %240, %234, %230 : vector<1x1xi1>, vector<1x1xf32>
    %242 = arith.subf %230, %241 : vector<1x1xf32>
    %243 = vector.broadcast %241 : vector<1x1xf32> to vector<1x32xf32>
    %244 = arith.mulf %243, %232 : vector<1x32xf32>
    %245 = arith.addf %225, %244 : vector<1x32xf32>
    %c0_126 = arith.constant 0 : index
    %c8_127 = arith.constant 8 : index
    %c0_128 = arith.constant 0 : index
    %246 = vector.load %arg5[%c0_126, %c8_127, %c0_128] : memref<1x16x32xf32, #tpu.memory_space<vmem>>, vector<1x1x32xf32>
    %247 = vector.shape_cast %246 : vector<1x1x32xf32> to vector<1x32xf32>
    %248 = vector.shape_cast %245 : vector<1x32xf32> to vector<1x1x32xf32>
    tpu.vector_store %arg5[%c0_126, %c8_127, %c0_128], %248 {strides = array<i32>} : memref<1x16x32xf32, #tpu.memory_space<vmem>>, vector<1x1x32xf32>,
    %249 = vector.broadcast %242 : vector<1x1xf32> to vector<1x32xf32>
    %250 = arith.mulf %249, %232 : vector<1x32xf32>
    %251 = vector.shape_cast %240 : vector<1x1xi1> to vector<1x1xi1>
    %252 = vector.broadcast %251 : vector<1x1xi1> to vector<1x32xi1>
    %253 = arith.select %252, %250, %245 : vector<1x32xi1>, vector<1x32xf32>
    %cst_129 = arith.constant 1.000000e+00 : f32
    %254 = vector.broadcast %cst_129 : f32 to vector<1x1xf32>
    %255 = arith.subf %235, %254 : vector<1x1xf32>
    %256 = arith.select %240, %255, %235 : vector<1x1xi1>, vector<1x1xf32>
    %c0_130 = arith.constant 0 : index
    %c9 = arith.constant 9 : index
    %c0_131 = arith.constant 0 : index
    %257 = vector.load %arg2[%c0_130, %c9, %c0_131] : memref<1x16x1xf32, #tpu.memory_space<vmem>>, vector<1x1x1xf32>
    %258 = vector.shape_cast %257 : vector<1x1x1xf32> to vector<1x1xf32>
    %c0_132 = arith.constant 0 : index
    %c9_133 = arith.constant 9 : index
    %c0_134 = arith.constant 0 : index
    %259 = vector.load %arg3[%c0_132, %c9_133, %c0_134] : memref<1x16x32xf32, #tpu.memory_space<vmem>>, vector<1x1x32xf32>
    %260 = vector.shape_cast %259 : vector<1x1x32xf32> to vector<1x32xf32>
    %cst_135 = arith.constant 1.000000e+00 : f32
    %261 = vector.broadcast %cst_135 : f32 to vector<1x1xf32>
    %262 = arith.subf %261, %256 : vector<1x1xf32>
    %263 = arith.addf %256, %258 : vector<1x1xf32>
    %c0_136 = arith.constant 0 : index
    %c9_137 = arith.constant 9 : index
    %c0_138 = arith.constant 0 : index
    %264 = vector.load %arg4[%c0_136, %c9_137, %c0_138] : memref<1x16x1xf32, #tpu.memory_space<vmem>>, vector<1x1x1xf32>
    %265 = vector.shape_cast %264 : vector<1x1x1xf32> to vector<1x1xf32>
    %266 = vector.shape_cast %263 : vector<1x1xf32> to vector<1x1x1xf32>
    tpu.vector_store %arg4[%c0_136, %c9_137, %c0_138], %266 {strides = array<i32>} : memref<1x16x1xf32, #tpu.memory_space<vmem>>, vector<1x1x1xf32>,
    %cst_139 = arith.constant 1.000000e+00 : f32
    %267 = vector.broadcast %cst_139 : f32 to vector<1x1xf32>
    %268 = arith.cmpf oge, %263, %267 : vector<1x1xf32>
    %269 = arith.select %268, %262, %258 : vector<1x1xi1>, vector<1x1xf32>
    %270 = arith.subf %258, %269 : vector<1x1xf32>
    %271 = vector.broadcast %269 : vector<1x1xf32> to vector<1x32xf32>
    %272 = arith.mulf %271, %260 : vector<1x32xf32>
    %273 = arith.addf %253, %272 : vector<1x32xf32>
    %c0_140 = arith.constant 0 : index
    %c9_141 = arith.constant 9 : index
    %c0_142 = arith.constant 0 : index
    %274 = vector.load %arg5[%c0_140, %c9_141, %c0_142] : memref<1x16x32xf32, #tpu.memory_space<vmem>>, vector<1x1x32xf32>
    %275 = vector.shape_cast %274 : vector<1x1x32xf32> to vector<1x32xf32>
    %276 = vector.shape_cast %273 : vector<1x32xf32> to vector<1x1x32xf32>
    tpu.vector_store %arg5[%c0_140, %c9_141, %c0_142], %276 {strides = array<i32>} : memref<1x16x32xf32, #tpu.memory_space<vmem>>, vector<1x1x32xf32>,
    %277 = vector.broadcast %270 : vector<1x1xf32> to vector<1x32xf32>
    %278 = arith.mulf %277, %260 : vector<1x32xf32>
    %279 = vector.shape_cast %268 : vector<1x1xi1> to vector<1x1xi1>
    %280 = vector.broadcast %279 : vector<1x1xi1> to vector<1x32xi1>
    %281 = arith.select %280, %278, %273 : vector<1x32xi1>, vector<1x32xf32>
    %cst_143 = arith.constant 1.000000e+00 : f32
    %282 = vector.broadcast %cst_143 : f32 to vector<1x1xf32>
    %283 = arith.subf %263, %282 : vector<1x1xf32>
    %284 = arith.select %268, %283, %263 : vector<1x1xi1>, vector<1x1xf32>
    %c0_144 = arith.constant 0 : index
    %c10 = arith.constant 10 : index
    %c0_145 = arith.constant 0 : index
    %285 = vector.load %arg2[%c0_144, %c10, %c0_145] : memref<1x16x1xf32, #tpu.memory_space<vmem>>, vector<1x1x1xf32>
    %286 = vector.shape_cast %285 : vector<1x1x1xf32> to vector<1x1xf32>
    %c0_146 = arith.constant 0 : index
    %c10_147 = arith.constant 10 : index
    %c0_148 = arith.constant 0 : index
    %287 = vector.load %arg3[%c0_146, %c10_147, %c0_148] : memref<1x16x32xf32, #tpu.memory_space<vmem>>, vector<1x1x32xf32>
    %288 = vector.shape_cast %287 : vector<1x1x32xf32> to vector<1x32xf32>
    %cst_149 = arith.constant 1.000000e+00 : f32
    %289 = vector.broadcast %cst_149 : f32 to vector<1x1xf32>
    %290 = arith.subf %289, %284 : vector<1x1xf32>
    %291 = arith.addf %284, %286 : vector<1x1xf32>
    %c0_150 = arith.constant 0 : index
    %c10_151 = arith.constant 10 : index
    %c0_152 = arith.constant 0 : index
    %292 = vector.load %arg4[%c0_150, %c10_151, %c0_152] : memref<1x16x1xf32, #tpu.memory_space<vmem>>, vector<1x1x1xf32>
    %293 = vector.shape_cast %292 : vector<1x1x1xf32> to vector<1x1xf32>
    %294 = vector.shape_cast %291 : vector<1x1xf32> to vector<1x1x1xf32>
    tpu.vector_store %arg4[%c0_150, %c10_151, %c0_152], %294 {strides = array<i32>} : memref<1x16x1xf32, #tpu.memory_space<vmem>>, vector<1x1x1xf32>,
    %cst_153 = arith.constant 1.000000e+00 : f32
    %295 = vector.broadcast %cst_153 : f32 to vector<1x1xf32>
    %296 = arith.cmpf oge, %291, %295 : vector<1x1xf32>
    %297 = arith.select %296, %290, %286 : vector<1x1xi1>, vector<1x1xf32>
    %298 = arith.subf %286, %297 : vector<1x1xf32>
    %299 = vector.broadcast %297 : vector<1x1xf32> to vector<1x32xf32>
    %300 = arith.mulf %299, %288 : vector<1x32xf32>
    %301 = arith.addf %281, %300 : vector<1x32xf32>
    %c0_154 = arith.constant 0 : index
    %c10_155 = arith.constant 10 : index
    %c0_156 = arith.constant 0 : index
    %302 = vector.load %arg5[%c0_154, %c10_155, %c0_156] : memref<1x16x32xf32, #tpu.memory_space<vmem>>, vector<1x1x32xf32>
    %303 = vector.shape_cast %302 : vector<1x1x32xf32> to vector<1x32xf32>
    %304 = vector.shape_cast %301 : vector<1x32xf32> to vector<1x1x32xf32>
    tpu.vector_store %arg5[%c0_154, %c10_155, %c0_156], %304 {strides = array<i32>} : memref<1x16x32xf32, #tpu.memory_space<vmem>>, vector<1x1x32xf32>,
    %305 = vector.broadcast %298 : vector<1x1xf32> to vector<1x32xf32>
    %306 = arith.mulf %305, %288 : vector<1x32xf32>
    %307 = vector.shape_cast %296 : vector<1x1xi1> to vector<1x1xi1>
    %308 = vector.broadcast %307 : vector<1x1xi1> to vector<1x32xi1>
    %309 = arith.select %308, %306, %301 : vector<1x32xi1>, vector<1x32xf32>
    %cst_157 = arith.constant 1.000000e+00 : f32
    %310 = vector.broadcast %cst_157 : f32 to vector<1x1xf32>
    %311 = arith.subf %291, %310 : vector<1x1xf32>
    %312 = arith.select %296, %311, %291 : vector<1x1xi1>, vector<1x1xf32>
    %c0_158 = arith.constant 0 : index
    %c11 = arith.constant 11 : index
    %c0_159 = arith.constant 0 : index
    %313 = vector.load %arg2[%c0_158, %c11, %c0_159] : memref<1x16x1xf32, #tpu.memory_space<vmem>>, vector<1x1x1xf32>
    %314 = vector.shape_cast %313 : vector<1x1x1xf32> to vector<1x1xf32>
    %c0_160 = arith.constant 0 : index
    %c11_161 = arith.constant 11 : index
    %c0_162 = arith.constant 0 : index
    %315 = vector.load %arg3[%c0_160, %c11_161, %c0_162] : memref<1x16x32xf32, #tpu.memory_space<vmem>>, vector<1x1x32xf32>
    %316 = vector.shape_cast %315 : vector<1x1x32xf32> to vector<1x32xf32>
    %cst_163 = arith.constant 1.000000e+00 : f32
    %317 = vector.broadcast %cst_163 : f32 to vector<1x1xf32>
    %318 = arith.subf %317, %312 : vector<1x1xf32>
    %319 = arith.addf %312, %314 : vector<1x1xf32>
    %c0_164 = arith.constant 0 : index
    %c11_165 = arith.constant 11 : index
    %c0_166 = arith.constant 0 : index
    %320 = vector.load %arg4[%c0_164, %c11_165, %c0_166] : memref<1x16x1xf32, #tpu.memory_space<vmem>>, vector<1x1x1xf32>
    %321 = vector.shape_cast %320 : vector<1x1x1xf32> to vector<1x1xf32>
    %322 = vector.shape_cast %319 : vector<1x1xf32> to vector<1x1x1xf32>
    tpu.vector_store %arg4[%c0_164, %c11_165, %c0_166], %322 {strides = array<i32>} : memref<1x16x1xf32, #tpu.memory_space<vmem>>, vector<1x1x1xf32>,
    %cst_167 = arith.constant 1.000000e+00 : f32
    %323 = vector.broadcast %cst_167 : f32 to vector<1x1xf32>
    %324 = arith.cmpf oge, %319, %323 : vector<1x1xf32>
    %325 = arith.select %324, %318, %314 : vector<1x1xi1>, vector<1x1xf32>
    %326 = arith.subf %314, %325 : vector<1x1xf32>
    %327 = vector.broadcast %325 : vector<1x1xf32> to vector<1x32xf32>
    %328 = arith.mulf %327, %316 : vector<1x32xf32>
    %329 = arith.addf %309, %328 : vector<1x32xf32>
    %c0_168 = arith.constant 0 : index
    %c11_169 = arith.constant 11 : index
    %c0_170 = arith.constant 0 : index
    %330 = vector.load %arg5[%c0_168, %c11_169, %c0_170] : memref<1x16x32xf32, #tpu.memory_space<vmem>>, vector<1x1x32xf32>
    %331 = vector.shape_cast %330 : vector<1x1x32xf32> to vector<1x32xf32>
    %332 = vector.shape_cast %329 : vector<1x32xf32> to vector<1x1x32xf32>
    tpu.vector_store %arg5[%c0_168, %c11_169, %c0_170], %332 {strides = array<i32>} : memref<1x16x32xf32, #tpu.memory_space<vmem>>, vector<1x1x32xf32>,
    %333 = vector.broadcast %326 : vector<1x1xf32> to vector<1x32xf32>
    %334 = arith.mulf %333, %316 : vector<1x32xf32>
    %335 = vector.shape_cast %324 : vector<1x1xi1> to vector<1x1xi1>
    %336 = vector.broadcast %335 : vector<1x1xi1> to vector<1x32xi1>
    %337 = arith.select %336, %334, %329 : vector<1x32xi1>, vector<1x32xf32>
    %cst_171 = arith.constant 1.000000e+00 : f32
    %338 = vector.broadcast %cst_171 : f32 to vector<1x1xf32>
    %339 = arith.subf %319, %338 : vector<1x1xf32>
    %340 = arith.select %324, %339, %319 : vector<1x1xi1>, vector<1x1xf32>
    %c0_172 = arith.constant 0 : index
    %c12 = arith.constant 12 : index
    %c0_173 = arith.constant 0 : index
    %341 = vector.load %arg2[%c0_172, %c12, %c0_173] : memref<1x16x1xf32, #tpu.memory_space<vmem>>, vector<1x1x1xf32>
    %342 = vector.shape_cast %341 : vector<1x1x1xf32> to vector<1x1xf32>
    %c0_174 = arith.constant 0 : index
    %c12_175 = arith.constant 12 : index
    %c0_176 = arith.constant 0 : index
    %343 = vector.load %arg3[%c0_174, %c12_175, %c0_176] : memref<1x16x32xf32, #tpu.memory_space<vmem>>, vector<1x1x32xf32>
    %344 = vector.shape_cast %343 : vector<1x1x32xf32> to vector<1x32xf32>
    %cst_177 = arith.constant 1.000000e+00 : f32
    %345 = vector.broadcast %cst_177 : f32 to vector<1x1xf32>
    %346 = arith.subf %345, %340 : vector<1x1xf32>
    %347 = arith.addf %340, %342 : vector<1x1xf32>
    %c0_178 = arith.constant 0 : index
    %c12_179 = arith.constant 12 : index
    %c0_180 = arith.constant 0 : index
    %348 = vector.load %arg4[%c0_178, %c12_179, %c0_180] : memref<1x16x1xf32, #tpu.memory_space<vmem>>, vector<1x1x1xf32>
    %349 = vector.shape_cast %348 : vector<1x1x1xf32> to vector<1x1xf32>
    %350 = vector.shape_cast %347 : vector<1x1xf32> to vector<1x1x1xf32>
    tpu.vector_store %arg4[%c0_178, %c12_179, %c0_180], %350 {strides = array<i32>} : memref<1x16x1xf32, #tpu.memory_space<vmem>>, vector<1x1x1xf32>,
    %cst_181 = arith.constant 1.000000e+00 : f32
    %351 = vector.broadcast %cst_181 : f32 to vector<1x1xf32>
    %352 = arith.cmpf oge, %347, %351 : vector<1x1xf32>
    %353 = arith.select %352, %346, %342 : vector<1x1xi1>, vector<1x1xf32>
    %354 = arith.subf %342, %353 : vector<1x1xf32>
    %355 = vector.broadcast %353 : vector<1x1xf32> to vector<1x32xf32>
    %356 = arith.mulf %355, %344 : vector<1x32xf32>
    %357 = arith.addf %337, %356 : vector<1x32xf32>
    %c0_182 = arith.constant 0 : index
    %c12_183 = arith.constant 12 : index
    %c0_184 = arith.constant 0 : index
    %358 = vector.load %arg5[%c0_182, %c12_183, %c0_184] : memref<1x16x32xf32, #tpu.memory_space<vmem>>, vector<1x1x32xf32>
    %359 = vector.shape_cast %358 : vector<1x1x32xf32> to vector<1x32xf32>
    %360 = vector.shape_cast %357 : vector<1x32xf32> to vector<1x1x32xf32>
    tpu.vector_store %arg5[%c0_182, %c12_183, %c0_184], %360 {strides = array<i32>} : memref<1x16x32xf32, #tpu.memory_space<vmem>>, vector<1x1x32xf32>,
    %361 = vector.broadcast %354 : vector<1x1xf32> to vector<1x32xf32>
    %362 = arith.mulf %361, %344 : vector<1x32xf32>
    %363 = vector.shape_cast %352 : vector<1x1xi1> to vector<1x1xi1>
    %364 = vector.broadcast %363 : vector<1x1xi1> to vector<1x32xi1>
    %365 = arith.select %364, %362, %357 : vector<1x32xi1>, vector<1x32xf32>
    %cst_185 = arith.constant 1.000000e+00 : f32
    %366 = vector.broadcast %cst_185 : f32 to vector<1x1xf32>
    %367 = arith.subf %347, %366 : vector<1x1xf32>
    %368 = arith.select %352, %367, %347 : vector<1x1xi1>, vector<1x1xf32>
    %c0_186 = arith.constant 0 : index
    %c13 = arith.constant 13 : index
    %c0_187 = arith.constant 0 : index
    %369 = vector.load %arg2[%c0_186, %c13, %c0_187] : memref<1x16x1xf32, #tpu.memory_space<vmem>>, vector<1x1x1xf32>
    %370 = vector.shape_cast %369 : vector<1x1x1xf32> to vector<1x1xf32>
    %c0_188 = arith.constant 0 : index
    %c13_189 = arith.constant 13 : index
    %c0_190 = arith.constant 0 : index
    %371 = vector.load %arg3[%c0_188, %c13_189, %c0_190] : memref<1x16x32xf32, #tpu.memory_space<vmem>>, vector<1x1x32xf32>
    %372 = vector.shape_cast %371 : vector<1x1x32xf32> to vector<1x32xf32>
    %cst_191 = arith.constant 1.000000e+00 : f32
    %373 = vector.broadcast %cst_191 : f32 to vector<1x1xf32>
    %374 = arith.subf %373, %368 : vector<1x1xf32>
    %375 = arith.addf %368, %370 : vector<1x1xf32>
    %c0_192 = arith.constant 0 : index
    %c13_193 = arith.constant 13 : index
    %c0_194 = arith.constant 0 : index
    %376 = vector.load %arg4[%c0_192, %c13_193, %c0_194] : memref<1x16x1xf32, #tpu.memory_space<vmem>>, vector<1x1x1xf32>
    %377 = vector.shape_cast %376 : vector<1x1x1xf32> to vector<1x1xf32>
    %378 = vector.shape_cast %375 : vector<1x1xf32> to vector<1x1x1xf32>
    tpu.vector_store %arg4[%c0_192, %c13_193, %c0_194], %378 {strides = array<i32>} : memref<1x16x1xf32, #tpu.memory_space<vmem>>, vector<1x1x1xf32>,
    %cst_195 = arith.constant 1.000000e+00 : f32
    %379 = vector.broadcast %cst_195 : f32 to vector<1x1xf32>
    %380 = arith.cmpf oge, %375, %379 : vector<1x1xf32>
    %381 = arith.select %380, %374, %370 : vector<1x1xi1>, vector<1x1xf32>
    %382 = arith.subf %370, %381 : vector<1x1xf32>
    %383 = vector.broadcast %381 : vector<1x1xf32> to vector<1x32xf32>
    %384 = arith.mulf %383, %372 : vector<1x32xf32>
    %385 = arith.addf %365, %384 : vector<1x32xf32>
    %c0_196 = arith.constant 0 : index
    %c13_197 = arith.constant 13 : index
    %c0_198 = arith.constant 0 : index
    %386 = vector.load %arg5[%c0_196, %c13_197, %c0_198] : memref<1x16x32xf32, #tpu.memory_space<vmem>>, vector<1x1x32xf32>
    %387 = vector.shape_cast %386 : vector<1x1x32xf32> to vector<1x32xf32>
    %388 = vector.shape_cast %385 : vector<1x32xf32> to vector<1x1x32xf32>
    tpu.vector_store %arg5[%c0_196, %c13_197, %c0_198], %388 {strides = array<i32>} : memref<1x16x32xf32, #tpu.memory_space<vmem>>, vector<1x1x32xf32>,
    %389 = vector.broadcast %382 : vector<1x1xf32> to vector<1x32xf32>
    %390 = arith.mulf %389, %372 : vector<1x32xf32>
    %391 = vector.shape_cast %380 : vector<1x1xi1> to vector<1x1xi1>
    %392 = vector.broadcast %391 : vector<1x1xi1> to vector<1x32xi1>
    %393 = arith.select %392, %390, %385 : vector<1x32xi1>, vector<1x32xf32>
    %cst_199 = arith.constant 1.000000e+00 : f32
    %394 = vector.broadcast %cst_199 : f32 to vector<1x1xf32>
    %395 = arith.subf %375, %394 : vector<1x1xf32>
    %396 = arith.select %380, %395, %375 : vector<1x1xi1>, vector<1x1xf32>
    %c0_200 = arith.constant 0 : index
    %c14 = arith.constant 14 : index
    %c0_201 = arith.constant 0 : index
    %397 = vector.load %arg2[%c0_200, %c14, %c0_201] : memref<1x16x1xf32, #tpu.memory_space<vmem>>, vector<1x1x1xf32>
    %398 = vector.shape_cast %397 : vector<1x1x1xf32> to vector<1x1xf32>
    %c0_202 = arith.constant 0 : index
    %c14_203 = arith.constant 14 : index
    %c0_204 = arith.constant 0 : index
    %399 = vector.load %arg3[%c0_202, %c14_203, %c0_204] : memref<1x16x32xf32, #tpu.memory_space<vmem>>, vector<1x1x32xf32>
    %400 = vector.shape_cast %399 : vector<1x1x32xf32> to vector<1x32xf32>
    %cst_205 = arith.constant 1.000000e+00 : f32
    %401 = vector.broadcast %cst_205 : f32 to vector<1x1xf32>
    %402 = arith.subf %401, %396 : vector<1x1xf32>
    %403 = arith.addf %396, %398 : vector<1x1xf32>
    %c0_206 = arith.constant 0 : index
    %c14_207 = arith.constant 14 : index
    %c0_208 = arith.constant 0 : index
    %404 = vector.load %arg4[%c0_206, %c14_207, %c0_208] : memref<1x16x1xf32, #tpu.memory_space<vmem>>, vector<1x1x1xf32>
    %405 = vector.shape_cast %404 : vector<1x1x1xf32> to vector<1x1xf32>
    %406 = vector.shape_cast %403 : vector<1x1xf32> to vector<1x1x1xf32>
    tpu.vector_store %arg4[%c0_206, %c14_207, %c0_208], %406 {strides = array<i32>} : memref<1x16x1xf32, #tpu.memory_space<vmem>>, vector<1x1x1xf32>,
    %cst_209 = arith.constant 1.000000e+00 : f32
    %407 = vector.broadcast %cst_209 : f32 to vector<1x1xf32>
    %408 = arith.cmpf oge, %403, %407 : vector<1x1xf32>
    %409 = arith.select %408, %402, %398 : vector<1x1xi1>, vector<1x1xf32>
    %410 = arith.subf %398, %409 : vector<1x1xf32>
    %411 = vector.broadcast %409 : vector<1x1xf32> to vector<1x32xf32>
    %412 = arith.mulf %411, %400 : vector<1x32xf32>
    %413 = arith.addf %393, %412 : vector<1x32xf32>
    %c0_210 = arith.constant 0 : index
    %c14_211 = arith.constant 14 : index
    %c0_212 = arith.constant 0 : index
    %414 = vector.load %arg5[%c0_210, %c14_211, %c0_212] : memref<1x16x32xf32, #tpu.memory_space<vmem>>, vector<1x1x32xf32>
    %415 = vector.shape_cast %414 : vector<1x1x32xf32> to vector<1x32xf32>
    %416 = vector.shape_cast %413 : vector<1x32xf32> to vector<1x1x32xf32>
    tpu.vector_store %arg5[%c0_210, %c14_211, %c0_212], %416 {strides = array<i32>} : memref<1x16x32xf32, #tpu.memory_space<vmem>>, vector<1x1x32xf32>,
    %417 = vector.broadcast %410 : vector<1x1xf32> to vector<1x32xf32>
    %418 = arith.mulf %417, %400 : vector<1x32xf32>
    %419 = vector.shape_cast %408 : vector<1x1xi1> to vector<1x1xi1>
    %420 = vector.broadcast %419 : vector<1x1xi1> to vector<1x32xi1>
    %421 = arith.select %420, %418, %413 : vector<1x32xi1>, vector<1x32xf32>
    %cst_213 = arith.constant 1.000000e+00 : f32
    %422 = vector.broadcast %cst_213 : f32 to vector<1x1xf32>
    %423 = arith.subf %403, %422 : vector<1x1xf32>
    %424 = arith.select %408, %423, %403 : vector<1x1xi1>, vector<1x1xf32>
    %c0_214 = arith.constant 0 : index
    %c15 = arith.constant 15 : index
    %c0_215 = arith.constant 0 : index
    %425 = vector.load %arg2[%c0_214, %c15, %c0_215] : memref<1x16x1xf32, #tpu.memory_space<vmem>>, vector<1x1x1xf32>
    %426 = vector.shape_cast %425 : vector<1x1x1xf32> to vector<1x1xf32>
    %c0_216 = arith.constant 0 : index
    %c15_217 = arith.constant 15 : index
    %c0_218 = arith.constant 0 : index
    %427 = vector.load %arg3[%c0_216, %c15_217, %c0_218] : memref<1x16x32xf32, #tpu.memory_space<vmem>>, vector<1x1x32xf32>
    %428 = vector.shape_cast %427 : vector<1x1x32xf32> to vector<1x32xf32>
    %cst_219 = arith.constant 1.000000e+00 : f32
    %429 = vector.broadcast %cst_219 : f32 to vector<1x1xf32>
    %430 = arith.subf %429, %424 : vector<1x1xf32>
    %431 = arith.addf %424, %426 : vector<1x1xf32>
    %c0_220 = arith.constant 0 : index
    %c15_221 = arith.constant 15 : index
    %c0_222 = arith.constant 0 : index
    %432 = vector.load %arg4[%c0_220, %c15_221, %c0_222] : memref<1x16x1xf32, #tpu.memory_space<vmem>>, vector<1x1x1xf32>
    %433 = vector.shape_cast %432 : vector<1x1x1xf32> to vector<1x1xf32>
    %434 = vector.shape_cast %431 : vector<1x1xf32> to vector<1x1x1xf32>
    tpu.vector_store %arg4[%c0_220, %c15_221, %c0_222], %434 {strides = array<i32>} : memref<1x16x1xf32, #tpu.memory_space<vmem>>, vector<1x1x1xf32>,
    %cst_223 = arith.constant 1.000000e+00 : f32
    %435 = vector.broadcast %cst_223 : f32 to vector<1x1xf32>
    %436 = arith.cmpf oge, %431, %435 : vector<1x1xf32>
    %437 = arith.select %436, %430, %426 : vector<1x1xi1>, vector<1x1xf32>
    %438 = arith.subf %426, %437 : vector<1x1xf32>
    %439 = vector.broadcast %437 : vector<1x1xf32> to vector<1x32xf32>
    %440 = arith.mulf %439, %428 : vector<1x32xf32>
    %441 = arith.addf %421, %440 : vector<1x32xf32>
    %c0_224 = arith.constant 0 : index
    %c15_225 = arith.constant 15 : index
    %c0_226 = arith.constant 0 : index
    %442 = vector.load %arg5[%c0_224, %c15_225, %c0_226] : memref<1x16x32xf32, #tpu.memory_space<vmem>>, vector<1x1x32xf32>
    %443 = vector.shape_cast %442 : vector<1x1x32xf32> to vector<1x32xf32>
    %444 = vector.shape_cast %441 : vector<1x32xf32> to vector<1x1x32xf32>
    tpu.vector_store %arg5[%c0_224, %c15_225, %c0_226], %444 {strides = array<i32>} : memref<1x16x32xf32, #tpu.memory_space<vmem>>, vector<1x1x32xf32>,
    %445 = vector.broadcast %438 : vector<1x1xf32> to vector<1x32xf32>
    %446 = arith.mulf %445, %428 : vector<1x32xf32>
    %447 = vector.shape_cast %436 : vector<1x1xi1> to vector<1x1xi1>
    %448 = vector.broadcast %447 : vector<1x1xi1> to vector<1x32xi1>
    %449 = arith.select %448, %446, %441 : vector<1x32xi1>, vector<1x32xf32>
    %cst_227 = arith.constant 1.000000e+00 : f32
    %450 = vector.broadcast %cst_227 : f32 to vector<1x1xf32>
    %451 = arith.subf %431, %450 : vector<1x1xf32>
    %452 = arith.select %436, %451, %431 : vector<1x1xi1>, vector<1x1xf32>
    %c0_228 = arith.constant 0 : index
    %c0_229 = arith.constant 0 : index
    %453 = vector.load %arg6[%c0_228, %c0_229] : memref<1x1xf32, #tpu.memory_space<vmem>>, vector<1x1xf32>
    tpu.vector_store %arg6[%c0_228, %c0_229], %452 {strides = array<i32>} : memref<1x1xf32, #tpu.memory_space<vmem>>, vector<1x1xf32>,
    %c0_230 = arith.constant 0 : index
    %c0_231 = arith.constant 0 : index
    %454 = vector.load %arg7[%c0_230, %c0_231] : memref<1x32xf32, #tpu.memory_space<vmem>>, vector<1x32xf32>
    tpu.vector_store %arg7[%c0_230, %c0_231], %449 {strides = array<i32>} : memref<1x32xf32, #tpu.memory_space<vmem>>, vector<1x32xf32>,
    return
  }
  func.func @transform_0(%arg0: i32, %arg1: i32) -> (i32, i32, i32) {
    %c0_i32 = arith.constant 0 : i32
    %c0_i32_0 = arith.constant 0 : i32
    return %arg0, %arg1, %c0_i32 : i32, i32, i32
  }
  func.func @transform_1(%arg0: i32, %arg1: i32) -> (i32, i32, i32) {
    %c0_i32 = arith.constant 0 : i32
    %c0_i32_0 = arith.constant 0 : i32
    return %arg0, %arg1, %c0_i32 : i32, i32, i32
  }
  func.func @transform_2(%arg0: i32, %arg1: i32) -> (i32, i32, i32) {
    %c0_i32 = arith.constant 0 : i32
    %c0_i32_0 = arith.constant 0 : i32
    return %arg0, %arg1, %c0_i32 : i32, i32, i32
  }
  func.func @transform_3(%arg0: i32, %arg1: i32) -> (i32, i32, i32) {
    %c0_i32 = arith.constant 0 : i32
    %c0_i32_0 = arith.constant 0 : i32
    return %arg0, %arg1, %c0_i32 : i32, i32, i32
  }
}

</mosaic_0001>

<llo_original>
// kernel: _forward_core.2
$region0: #{_forward_core.2}
  #allocation0 [shape = 'u32[]', space=smem, size = 0x4, offset = 0x4, fixed_abs, tag = 'smem constant byte address 0x4 - core index']
  #allocation1 [shape = 'u32[72,128]{1,0:T(1,128)}', space=vmem, size = 0x9000, scoped, tag = 'internal scratch']
  #allocation2 [shape = 'f32[1,1]{1,0:T(1,128)S(1)}', space=vmem, size = 0x200, scoped, tag = 'scoped memory for _forward_core.2']
  %s0 = inlined_call_operand.vmem [shape: f32[2,18,32], index: 0, kind: input, shape index: {}]
  %s1 = inlined_call_operand.vmem [shape: f32[2,16,1], index: 1, kind: input, shape index: {}]
  %s2 = inlined_call_operand.vmem [shape: bf16[3,32,32], index: 2, kind: input, shape index: {}]
  %s3 = inlined_call_operand.vmem [shape: f32[1,32], index: 3, kind: input, shape index: {}]
  %s4 = inlined_call_operand.vmem [shape: f32[1,32], index: 4, kind: input, shape index: {}]
  %s5 = inlined_call_operand.<no memory space> [shape: f32[1,1], index: 5, kind: input, shape index: {}]
  %s6 = inlined_call_operand.vmem [shape: f32[2,16,1], index: 6, kind: output, shape index: {}]
  %s7 = sld [smem:[#allocation0]]
  $region57: #{_forward_core.2} parent=0
    _
  %s9 = ssub.s32 1, %s7
  %s10 = scalar_select 0, %s9, %s7
  %v11 = vstv %s5
  %12 = vst [vmem:[#allocation2] sm:$0x1] %v11
  loop: start=0, step=1, limit=4
  $region2: #{_forward_core.2} parent=0 // loop_pre_header
    _
  $region3: #{_forward_core.2} parent=0 // loop_header
    %s14 = sphi 0, %s18
    %p15 = scmp.ge.s32.totalorder %s14, 4
    %s24 = sphi 0, %s26
    %s27 = sphi 0, %s24
    %s28 = sphi 0, %s27
    %s44 = sphi 0, %s28
    %s50 = sphi 0, %s52
    %s53 = sphi 0, %s50
    %s54 = sphi 0, %s53
    %s70 = sphi 0, %s54
    %s74 = sphi 0, %s74
    %s76 = sphi 0, %s74
    %s77 = sphi 0, %s76
    %s91 = sphi 0, %s77
    %s95 = sphi 0, %s95
    %s97 = sphi 0, %s95
    %s98 = sphi 0, %s97
    %s112 = sphi 0, %s98
    %s116 = sphi 0, %s116
    %s118 = sphi 0, %s116
    %s119 = sphi 0, %s118
    %s133 = sphi 0, %s119
    %s137 = sphi 0, %s137
    %s139 = sphi 0, %s137
    %s140 = sphi 0, %s139
    %s154 = sphi 0, %s140
    %s160 = sphi 0, %s162
    %s163 = sphi 0, %s160
    %s164 = sphi 0, %s163
    %s180 = sphi 0, %s164
  $region4: #{_forward_core.2} parent=0 // loop_header_branch
    %17 = sbr.rel (%p15) target = $region8
  $region5: #{_forward_core.2} parent=0 // loop_body
    %s19 = ssub.s32 %s14, 1
    %s20 = ssub.s32 %s14, 2
    %s21 = sadd.s32 %s14, 1
    %s22 = ssub.s32 %s14, %s21
    %p23 = scmp.eq.s32.totalorder %s22, 0
    %s25 = sadd.s32 %s24, 1
    %s26 = scalar_select %p23, %s24, %s25
    %p29 = pneg %p23
    %p30 = scmp.eq.s32.totalorder %s14, 1
    %p31 = por %p29, %p30
    %p32 = scmp.ne.s32.totalorder %s24, %s27
    %p33 = scmp.eq.s32.totalorder %s14, 0
    %p34 = por %p32, %p33
    %p35 = scmp.ne.s32.totalorder %s24, %s27
    %p36 = scmp.eq.s32.totalorder %s19, 1
    %p37 = por %p35, %p36
    %p38 = scmp.ne.s32.totalorder %s27, %s28
    %p39 = scmp.eq.s32.totalorder %s19, 0
    %p40 = por %p38, %p39
    %p41 = scmp.ne.s32.totalorder %s27, %s28
    %p42 = scmp.eq.s32.totalorder %s20, 1
    %p43 = por %p41, %p42
    %p45 = scmp.ne.s32.totalorder %s28, %s44
    %p46 = scmp.eq.s32.totalorder %s20, 0
    %p47 = por %p45, %p46
    %s48 = ssub.s32 %s14, %s21
    %p49 = scmp.eq.s32.totalorder %s48, 0
    %s51 = sadd.s32 %s50, 1
    %s52 = scalar_select %p49, %s50, %s51
    %p55 = pneg %p49
    %p56 = scmp.eq.s32.totalorder %s14, 1
    %p57 = por %p55, %p56
    %p58 = scmp.ne.s32.totalorder %s50, %s53
    %p59 = scmp.eq.s32.totalorder %s14, 0
    %p60 = por %p58, %p59
    %p61 = scmp.ne.s32.totalorder %s50, %s53
    %p62 = scmp.eq.s32.totalorder %s19, 1
    %p63 = por %p61, %p62
    %p64 = scmp.ne.s32.totalorder %s53, %s54
    %p65 = scmp.eq.s32.totalorder %s19, 0
    %p66 = por %p64, %p65
    %p67 = scmp.ne.s32.totalorder %s53, %s54
    %p68 = scmp.eq.s32.totalorder %s20, 1
    %p69 = por %p67, %p68
    %p71 = scmp.ne.s32.totalorder %s54, %s70
    %p72 = scmp.eq.s32.totalorder %s20, 0
    %p73 = por %p71, %p72
    %s75 = sadd.s32 %s74, 1
    %p78 = scmp.eq.s32.totalorder %s14, 1
    %p79 = scmp.ne.s32.totalorder %s74, %s76
    %p80 = scmp.eq.s32.totalorder %s14, 0
    %p81 = por %p79, %p80
    %p82 = scmp.ne.s32.totalorder %s74, %s76
    %p83 = scmp.eq.s32.totalorder %s19, 1
    %p84 = por %p82, %p83
    %p85 = scmp.ne.s32.totalorder %s76, %s77
    %p86 = scmp.eq.s32.totalorder %s19, 0
    %p87 = por %p85, %p86
    %p88 = scmp.ne.s32.totalorder %s76, %s77
    %p89 = scmp.eq.s32.totalorder %s20, 1
    %p90 = por %p88, %p89
    %p92 = scmp.ne.s32.totalorder %s77, %s91
    %p93 = scmp.eq.s32.totalorder %s20, 0
    %p94 = por %p92, %p93
    %s96 = sadd.s32 %s95, 1
    %p99 = scmp.eq.s32.totalorder %s14, 1
    %p100 = scmp.ne.s32.totalorder %s95, %s97
    %p101 = scmp.eq.s32.totalorder %s14, 0
    %p102 = por %p100, %p101
    %p103 = scmp.ne.s32.totalorder %s95, %s97
    %p104 = scmp.eq.s32.totalorder %s19, 1
    %p105 = por %p103, %p104
    %p106 = scmp.ne.s32.totalorder %s97, %s98
    %p107 = scmp.eq.s32.totalorder %s19, 0
    %p108 = por %p106, %p107
    %p109 = scmp.ne.s32.totalorder %s97, %s98
    %p110 = scmp.eq.s32.totalorder %s20, 1
    %p111 = por %p109, %p110
    %p113 = scmp.ne.s32.totalorder %s98, %s112
    %p114 = scmp.eq.s32.totalorder %s20, 0
    %p115 = por %p113, %p114
    %s117 = sadd.s32 %s116, 1
    %p120 = scmp.eq.s32.totalorder %s14, 1
    %p121 = scmp.ne.s32.totalorder %s116, %s118
    %p122 = scmp.eq.s32.totalorder %s14, 0
    %p123 = por %p121, %p122
    %p124 = scmp.ne.s32.totalorder %s116, %s118
    %p125 = scmp.eq.s32.totalorder %s19, 1
    %p126 = por %p124, %p125
    %p127 = scmp.ne.s32.totalorder %s118, %s119
    %p128 = scmp.eq.s32.totalorder %s19, 0
    %p129 = por %p127, %p128
    %p130 = scmp.ne.s32.totalorder %s118, %s119
    %p131 = scmp.eq.s32.totalorder %s20, 1
    %p132 = por %p130, %p131
    %p134 = scmp.ne.s32.totalorder %s119, %s133
    %p135 = scmp.eq.s32.totalorder %s20, 0
    %p136 = por %p134, %p135
    %s138 = sadd.s32 %s137, 1
    %p141 = scmp.eq.s32.totalorder %s14, 1
    %p142 = scmp.ne.s32.totalorder %s137, %s139
    %p143 = scmp.eq.s32.totalorder %s14, 0
    %p144 = por %p142, %p143
    %p145 = scmp.ne.s32.totalorder %s137, %s139
    %p146 = scmp.eq.s32.totalorder %s19, 1
    %p147 = por %p145, %p146
    %p148 = scmp.ne.s32.totalorder %s139, %s140
    %p149 = scmp.eq.s32.totalorder %s19, 0
    %p150 = por %p148, %p149
    %p151 = scmp.ne.s32.totalorder %s139, %s140
    %p152 = scmp.eq.s32.totalorder %s20, 1
    %p153 = por %p151, %p152
    %p155 = scmp.ne.s32.totalorder %s140, %s154
    %p156 = scmp.eq.s32.totalorder %s20, 0
    %p157 = por %p155, %p156
    %s158 = ssub.s32 %s14, %s21
    %p159 = scmp.eq.s32.totalorder %s158, 0
    %s161 = sadd.s32 %s160, 1
    %s162 = scalar_select %p159, %s160, %s161
    %p165 = pneg %p159
    %p166 = scmp.eq.s32.totalorder %s14, 1
    %p167 = por %p165, %p166
    %p168 = scmp.ne.s32.totalorder %s160, %s163
    %p169 = scmp.eq.s32.totalorder %s14, 0
    %p170 = por %p168, %p169
    %p171 = scmp.ne.s32.totalorder %s160, %s163
    %p172 = scmp.eq.s32.totalorder %s19, 1
    %p173 = por %p171, %p172
    %p174 = scmp.ne.s32.totalorder %s163, %s164
    %p175 = scmp.eq.s32.totalorder %s19, 0
    %p176 = por %p174, %p175
    %p177 = scmp.ne.s32.totalorder %s163, %s164
    %p178 = scmp.eq.s32.totalorder %s20, 1
    %p179 = por %p177, %p178
    %p181 = scmp.ne.s32.totalorder %s164, %s180
    %p182 = scmp.eq.s32.totalorder %s20, 0
    %p183 = por %p181, %p182
    %p184 = scmp.le.s32.totalorder 1, %s14
    %p185 = scmp.lt.s32.totalorder %s14, 3
    %p186 = pnand %p184, %p185
    %p187 = pneg %p186
    // Predicated region
    $region9: #{_forward_core.2} parent=5 // pred_check
      _
    $region10: #{_forward_core.2} parent=5 // pred_check_branch
      %189 = sbr.rel (%p186) target = $region12
    $region11: #{_forward_core.2} parent=5 // pred_region
      %s190 = ssub.s32 %s14, 1
      // Predicated region
      $region13: #{_forward_core.2} parent=11 // pred_check
        %p191 = pneg %p87
      $region14: #{_forward_core.2} parent=11 // pred_check_branch
        %193 = sbr.rel (%p191) target = $region16
      $region15: #{_forward_core.2} parent=11 // pred_region
        _
      $region16: #{_forward_core.2} parent=11 // pred_fallthru
        _
      // Predicated region
      $region17: #{_forward_core.2} parent=11 // pred_check
        %p194 = pneg %p108
      $region18: #{_forward_core.2} parent=11 // pred_check_branch
        %196 = sbr.rel (%p194) target = $region20
      $region19: #{_forward_core.2} parent=11 // pred_region
        _
      $region20: #{_forward_core.2} parent=11 // pred_fallthru
        _
      // Predicated region
      $region21: #{_forward_core.2} parent=11 // pred_check
        %p197 = pneg %p129
      $region22: #{_forward_core.2} parent=11 // pred_check_branch
        %199 = sbr.rel (%p197) target = $region24
      $region23: #{_forward_core.2} parent=11 // pred_region
        _
      $region24: #{_forward_core.2} parent=11 // pred_fallthru
        _
      // Predicated region
      $region25: #{_forward_core.2} parent=11 // pred_check
        %p200 = pneg %p150
      $region26: #{_forward_core.2} parent=11 // pred_check_branch
        %202 = sbr.rel (%p200) target = $region28
      $region27: #{_forward_core.2} parent=11 // pred_region
        _
      $region28: #{_forward_core.2} parent=11 // pred_fallthru
        _
    $region12: #{_forward_core.2} parent=5 // pred_fallthru
      _
    %p203 = scmp.lt.s32.totalorder %s14, 2
    // Predicated region
    $region29: #{_forward_core.2} parent=5 // pred_check
      %p204 = pneg %p203
    $region30: #{_forward_core.2} parent=5 // pred_check_branch
      %206 = sbr.rel (%p204) target = $region32
    $region31: #{_forward_core.2} parent=5 // pred_region
      // Predicated region
      $region33: #{_forward_core.2} parent=31 // pred_check
        %p207 = pneg %p34
      $region34: #{_forward_core.2} parent=31 // pred_check_branch
        %209 = sbr.rel (%p207) target = $region36
      $region35: #{_forward_core.2} parent=31 // pred_region
        %p210 = scmp.lt.s32.totalorder %s14, 1
        %s211 = scalar_select %p210, %s14, 1
        %s212 = smul.addr %s211, 3
        %s213 = smul.addr %s212, 8
        %s214 = scalar_lea.vmem %s0, %s213
      $region36: #{_forward_core.2} parent=31 // pred_fallthru
        _
      // Predicated region
      $region37: #{_forward_core.2} parent=31 // pred_check
        %p215 = pneg %p60
      $region38: #{_forward_core.2} parent=31 // pred_check_branch
        %217 = sbr.rel (%p215) target = $region40
      $region39: #{_forward_core.2} parent=31 // pred_region
        %p218 = scmp.lt.s32.totalorder %s14, 1
        %s219 = scalar_select %p218, %s14, 1
        %s220 = smul.addr %s219, 2
        %s221 = smul.addr %s220, 8
        %s222 = scalar_lea.vmem %s1, %s221
      $region40: #{_forward_core.2} parent=31 // pred_fallthru
        _
    $region32: #{_forward_core.2} parent=5 // pred_fallthru
      _
    %p223 = scmp.le.s32.totalorder 1, %s14
    %p224 = scmp.lt.s32.totalorder %s14, 3
    %p225 = pnand %p223, %p224
    %p226 = pneg %p225
    // Predicated region
    $region41: #{_forward_core.2} parent=5 // pred_check
      _
    $region42: #{_forward_core.2} parent=5 // pred_check_branch
      %228 = sbr.rel (%p225) target = $region44
    $region43: #{_forward_core.2} parent=5 // pred_region
      %s229 = ssub.s32 %s14, 1
      %p230 = scmp.lt.s32.totalorder %s19, 1
      %s231 = scalar_select %p230, %s19, 1
      %s232 = smul.addr %s231, 3
      %s233 = smul.addr %s232, 8
      %s234 = scalar_lea.vmem %s0, %s233
      %p235 = pneg %p40
      %p236 = pneg %p37
      %p237 = scmp.lt.s32.totalorder %s19, 1
      %s238 = scalar_select %p237, %s19, 1
      %s239 = smul.addr %s238, 2
      %s240 = smul.addr %s239, 8
      %s241 = scalar_lea.vmem %s1, %s240
      %p242 = pneg %p66
      %p243 = pneg %p63
      %p244 = pneg %p87
      %p245 = pneg %p84
      %p246 = pneg %p108
      %p247 = pneg %p105
      %p248 = pneg %p129
      %p249 = pneg %p126
      %p250 = pneg %p150
      %p251 = pneg %p147
      %p252 = pneg %p176
      %p253 = pneg %p173
      %p254 = scmp.lt.s32.totalorder %s19, 1
      %s255 = scalar_select %p254, %s19, 1
      %s256 = smul.addr %s255, 2
      %s257 = smul.addr %s256, 8
      %s258 = scalar_lea.vmem %s6, %s257
      %p259 = scmp.lt.s32.totalorder %s19, 1
      %s260 = scalar_select %p259, %s19, 1
      %s261 = smul.addr %s260, 3
      %s262 = smul.addr %s261, 8
      %s263 = scalar_lea.vmem %s0, %s262
      %p264 = scmp.lt.s32.totalorder %s19, 1
      %s265 = scalar_select %p264, %s19, 1
      %s266 = smul.addr %s265, 2
      %s267 = smul.addr %s266, 8
      %s268 = scalar_lea.vmem %s1, %s267
      %p269 = scmp.lt.s32.totalorder %s19, 1
      %s270 = scalar_select %p269, %s19, 1
      %s271 = smul.addr %s270, 2
      %s272 = smul.addr %s271, 8
      %s273 = scalar_lea.vmem %s6, %s272
      %v275 = vld [vmem:[%s263] sm:$0xff]
      %v276 = vld [vmem:[%s263 + $0x8] sm:$0xff]
      %v277 = vpack.c.bf16 %v276, %v275
      %v278 = vld [vmem:[%s2] sm:$0xf]
      %v279 = vld [vmem:[%s2 + $0x4] sm:$0xf]
      %v280 = vld [vmem:[%s2 + $0x8] sm:$0xf]
      %v281 = vld [vmem:[%s2 + $0xc] sm:$0xf]
      %v282 = vld [vmem:[%s263 + $0x1] sm:$0xff]
      %v283 = vld [vmem:[%s263 + $0x9] sm:$0xff]
      %v284 = vpack.c.bf16 %v283, %v282
      %s285 = scalar_lea.vmem %s2, 16
      %v286 = vld [vmem:[%s285] sm:$0xf]
      %v287 = vld [vmem:[%s285 + $0x4] sm:$0xf]
      %v288 = vld [vmem:[%s285 + $0x8] sm:$0xf]
      %v289 = vld [vmem:[%s285 + $0xc] sm:$0xf]
      %v294 = vunpack.c.l.b16 %v286
      %v295 = vunpack.c.l.b16 %v287
      %v296 = vunpack.c.l.b16 %v288
      %v297 = vunpack.c.l.b16 %v289
      %v298 = vpack.c.b16 %v295, %v294
      %v299 = vpack.c.b16 %v297, %v296
      %vm302 = vcmask 261120
      %v304 = vsel %vm302, %v284, 0
      %306 = vmatpush.bf16.msra.mxu0 0
      %307 = vmatpush.bf16.msra.mxu0 0
      %308 = vmatpush.bf16.msra.mxu0 0
      %309 = vmatpush.bf16.msra.mxu0 0
      %310 = vmatpush.bf16.msra.mxu0 0
      %311 = vmatpush.bf16.msra.mxu0 0
      %312 = vmatpush.bf16.msra.mxu0 %v299
      %313 = vmatpush.bf16.msra.mxu0 %v298
      %314 = vmatmul.bf16.gmra.mxu0 %v304
      %v315 = vpop.f32.mrf.mxu0
      %v316 = vadd.f32 0.0, %v315
      %v317 = vpop.f32.mrf.mxu0
      %v318 = vadd.f32 0.0, %v317
      %319 = vdwg.mxu0
      %v324 = vunpack.c.l.b16 %v278
      %v325 = vunpack.c.l.b16 %v279
      %v326 = vunpack.c.l.b16 %v280
      %v327 = vunpack.c.l.b16 %v281
      %v328 = vpack.c.b16 %v325, %v324
      %v329 = vpack.c.b16 %v327, %v326
      %v333 = vsel %vm302, %v277, 0
      %335 = vmatpush.bf16.msra.mxu0 0
      %336 = vmatpush.bf16.msra.mxu0 0
      %337 = vmatpush.bf16.msra.mxu0 0
      %338 = vmatpush.bf16.msra.mxu0 0
      %339 = vmatpush.bf16.msra.mxu0 0
      %340 = vmatpush.bf16.msra.mxu0 0
      %341 = vmatpush.bf16.msra.mxu0 %v329
      %342 = vmatpush.bf16.msra.mxu0 %v328
      %343 = vmatmul.bf16.gmra.mxu0 %v333
      %v344 = vpop.f32.mrf.mxu0
      %v345 = vadd.f32 %v316, %v344
      %v346 = vpop.f32.mrf.mxu0
      %v347 = vadd.f32 %v318, %v346
      %348 = vdwg.mxu0
      %v349 = vld [vmem:[%s263 + $0x2] sm:$0xff]
      %v350 = vld [vmem:[%s263 + $0xa] sm:$0xff]
      %v351 = vpack.c.bf16 %v350, %v349
      %s352 = scalar_lea.vmem %s2, 32
      %v353 = vld [vmem:[%s352] sm:$0xf]
      %v354 = vld [vmem:[%s352 + $0x4] sm:$0xf]
      %v355 = vld [vmem:[%s352 + $0x8] sm:$0xf]
      %v356 = vld [vmem:[%s352 + $0xc] sm:$0xf]
      %v361 = vunpack.c.l.b16 %v353
      %v362 = vunpack.c.l.b16 %v354
      %v363 = vunpack.c.l.b16 %v355
      %v364 = vunpack.c.l.b16 %v356
      %v365 = vpack.c.b16 %v362, %v361
      %v366 = vpack.c.b16 %v364, %v363
      %v370 = vsel %vm302, %v351, 0
      %372 = vmatpush.bf16.msra.mxu0 0
      %373 = vmatpush.bf16.msra.mxu0 0
      %374 = vmatpush.bf16.msra.mxu0 0
      %375 = vmatpush.bf16.msra.mxu0 0
      %376 = vmatpush.bf16.msra.mxu0 0
      %377 = vmatpush.bf16.msra.mxu0 0
      %378 = vmatpush.bf16.msra.mxu0 %v366
      %379 = vmatpush.bf16.msra.mxu0 %v365
      %380 = vmatmul.bf16.gmra.mxu0 %v370
      %v381 = vpop.f32.mrf.mxu0
      %v382 = vadd.f32 0.0, %v381
      %v383 = vpop.f32.mrf.mxu0
      %v384 = vadd.f32 0.0, %v383
      %385 = vdwg.mxu0
      %v386 = vadd.f32 %v345, %v382
      %v387 = vadd.f32 %v347, %v384
      %v388 = vld [vmem:[%s3] sm:$0x1]
      %v390 = vperm.slane %v388, 0
      %v392 = vadd.f32 %v386, %v390
      %v393 = vadd.f32 %v387, %v390
      %v394 = vmax.f32 %v392, 0.0
      %v395 = vmax.f32 %v393, 0.0
      %v396 = vld [vmem:[%s4] sm:$0x1]
      %v398 = vperm.slane %v396, 0
      %v400 = vmul.f32 %v394, %v398
      %v401 = vmul.f32 %v395, %v398
      %v402 = vsel %vm302, %v400, 0.0
      %403 = vadd.xlane.f32.xlu0 %v402
      %v404 = vpop.xlane.xlu0 %403
      %v405 = vsel %vm302, %v401, 0.0
      %406 = vadd.xlane.f32.xlu0 %v405
      %v407 = vpop.xlane.xlu0 %406
      %v408 = vld [vmem:[#allocation2] sm:$0x1]
      %v410 = vperm.slane %v408, 0
      %v412 = vadd.f32 %v404, %v410
      %v413 = vadd.f32 %v407, %v410
      %v414 = vxor.u32 %v412, 2147483648
      %v415 = vxor.u32 %v413, 2147483648
      %v416 = vmul.f32 %v414, 1.442695
      %v417 = vpow.pop %v416
      %v418 = vmul.f32 %v415, 1.442695
      %v419 = vpow.pop %v418
      %v420 = vadd.f32 %v417, 1.0
      %v421 = vadd.f32 %v419, 1.0
      %v422 = vrcp.pop %v420
      %v423 = vmul.f32 %v420, %v422
      %v424 = vsub.f32 1.0, %v423
      %v425 = vmul.f32 %v422, %v424
      %v426 = vadd.f32 %v422, %v425
      %vm427 = vweird.f32 %v420
      %vm428 = vweird.f32 %v422
      %vm429 = vmor %vm427, %vm428
      %v430 = vsel %vm429, %v422, %v426
      %v431 = vand.u32 2147483647, %v420
      %vm432 = vcmp.eq.f32.partialorder %v431, 8.507059e+37
      %v433 = vand.u32 %v420, 2147483648
      %v434 = vor.u32 1.1754944e-38, %v433
      %v435 = vsel %vm432, %v434, %v430
      %v436 = vmul.f32 1.0, %v435
      %v437 = vrcp.pop %v421
      %v438 = vmul.f32 %v421, %v437
      %v439 = vsub.f32 1.0, %v438
      %v440 = vmul.f32 %v437, %v439
      %v441 = vadd.f32 %v437, %v440
      %vm442 = vweird.f32 %v421
      %vm443 = vweird.f32 %v437
      %vm444 = vmor %vm442, %vm443
      %v445 = vsel %vm444, %v437, %v441
      %v446 = vand.u32 2147483647, %v421
      %vm447 = vcmp.eq.f32.partialorder %v446, 8.507059e+37
      %v448 = vand.u32 %v421, 2147483648
      %v449 = vor.u32 1.1754944e-38, %v448
      %v450 = vsel %vm447, %v449, %v445
      %v451 = vmul.f32 1.0, %v450
      %v452 = vmax.f32 %v436, 0.0
      %v453 = vmax.f32 %v451, 0.0
      %v454 = vld [vmem:[%s268] sm:$0xff]
      %v455 = vld [vmem:[%s268 + $0x8] sm:$0xff]
      %v456 = vmul.f32 %v452, %v454
      %v457 = vmul.f32 %v453, %v455
      %vm458 = vcmask 7168
      %459 = vst.msk [vmem:[%s273] sm:$0xff] %vm458, %v456
      %460 = vst.msk [vmem:[%s273 + $0x8] sm:$0xff] %vm458, %v457
      %p461 = scmp.lt.s32.totalorder %s19, 1
      %s462 = scalar_select %p461, %s19, 1
      %s463 = smul.addr %s462, 2
      %s464 = smul.addr %s463, 8
      %s465 = scalar_lea.vmem %s6, %s464
      // Predicated region
      $region45: #{_forward_core.2} parent=43 // pred_check
        %p466 = pneg %p173
      $region46: #{_forward_core.2} parent=43 // pred_check_branch
        %468 = sbr.rel (%p466) target = $region48
      $region47: #{_forward_core.2} parent=43 // pred_region
        _
      $region48: #{_forward_core.2} parent=43 // pred_fallthru
        _
    $region44: #{_forward_core.2} parent=5 // pred_fallthru
      _
    %p469 = scmp.le.s32.totalorder 2, %s14
    // Predicated region
    $region49: #{_forward_core.2} parent=5 // pred_check
      %p470 = pneg %p469
    $region50: #{_forward_core.2} parent=5 // pred_check_branch
      %472 = sbr.rel (%p470) target = $region52
    $region51: #{_forward_core.2} parent=5 // pred_region
      %s473 = ssub.s32 %s14, 2
      // Predicated region
      $region53: #{_forward_core.2} parent=51 // pred_check
        %p474 = pneg %p179
      $region54: #{_forward_core.2} parent=51 // pred_check_branch
        %476 = sbr.rel (%p474) target = $region56
      $region55: #{_forward_core.2} parent=51 // pred_region
        %p477 = scmp.lt.s32.totalorder %s20, 1
        %s478 = scalar_select %p477, %s20, 1
        %s479 = smul.addr %s478, 2
        %s480 = smul.addr %s479, 8
        %s481 = scalar_lea.vmem %s6, %s480
      $region56: #{_forward_core.2} parent=51 // pred_fallthru
        _
    $region52: #{_forward_core.2} parent=5 // pred_fallthru
      _
  $region6: #{_forward_core.2} parent=0 // loop_footer
    %s18 = sadd.s32 1, %s14
  $region7: #{_forward_core.2} parent=0 // loop_footer_branch
    %13 = sbr.rel target = $region3
  $region8: #{_forward_core.2} parent=0 // loop_exit
    _

// kernel: _forward_core.3
$region0: #{_forward_core.3}
  #allocation0 [shape = 'u32[]', space=smem, size = 0x4, offset = 0x4, fixed_abs, tag = 'smem constant byte address 0x4 - core index']
  #allocation1 [shape = 'u32[72,128]{1,0:T(1,128)}', space=vmem, size = 0x9000, scoped, tag = 'internal scratch']
  #allocation2 [shape = 'f32[1,1]{1,0:T(1,128)}', space=vmem, size = 0x200, scoped, tag = 'scratch operand']
  #allocation3 [shape = 'f32[1,32]{1,0:T(1,128)}', space=vmem, size = 0x200, scoped, tag = 'scratch operand']
  %s0 = inlined_call_operand.vmem [shape: f32[2,16,1], index: 0, kind: input, shape index: {}]
  %s1 = inlined_call_operand.vmem [shape: f32[2,16,32], index: 1, kind: input, shape index: {}]
  %s2 = inlined_call_operand.vmem [shape: f32[2,16,1], index: 2, kind: output, shape index: {0}]
  %s3 = inlined_call_operand.vmem [shape: f32[2,16,32], index: 3, kind: output, shape index: {1}]
  %4 = xla_tuple %s2, %s3
  %s5 = sld [smem:[#allocation0]]
  $region53: #{_forward_core.3} parent=0
    _
  %s7 = ssub.s32 1, %s5
  %s8 = scalar_select 0, %s7, %s5
  loop: start=0, step=1, limit=4
  $region2: #{_forward_core.3} parent=0 // loop_pre_header
    _
  $region3: #{_forward_core.3} parent=0 // loop_header
    %s10 = sphi 0, %s14
    %p11 = scmp.ge.s32.totalorder %s10, 4
    %s17 = sphi 0, %s29
    %s18 = sphi 0, %s25
    %s19 = sphi 0, %s17
    %s20 = sphi 0, %s18
    %s21 = sphi 0, %s19
    %s22 = sphi 0, %s20
    %s34 = sphi 0, %s36
    %s37 = sphi 0, %s34
    %s38 = sphi 0, %s37
    %s54 = sphi 0, %s38
    %s62 = sphi 0, %s64
    %s65 = sphi 0, %s62
    %s66 = sphi 0, %s65
    %s82 = sphi 0, %s66
    %s90 = sphi 0, %s92
    %s93 = sphi 0, %s90
    %s94 = sphi 0, %s93
    %s110 = sphi 0, %s94
    %s118 = sphi 0, %s120
    %s121 = sphi 0, %s118
    %s122 = sphi 0, %s121
    %s138 = sphi 0, %s122
  $region4: #{_forward_core.3} parent=0 // loop_header_branch
    %13 = sbr.rel (%p11) target = $region8
  $region5: #{_forward_core.3} parent=0 // loop_body
    %s15 = ssub.s32 %s10, 1
    %s16 = ssub.s32 %s10, 2
    %s23 = sadd.s32 1, %s18
    %p24 = scmp.ge.s32.totalorder %s23, 1
    %s25 = scalar_select %p24, 0, %s23
    %s26 = sadd.s32 1, %s17
    %s27 = scalar_select %p24, %s26, %s17
    %p28 = scmp.ge.s32.totalorder %s27, 2
    %s29 = scalar_select %p28, 0, %s27
    %s30 = ssub.s32 %s17, %s29
    %s31 = ssub.s32 %s18, %s25
    %s32 = sor.u32 %s30, %s31
    %p33 = scmp.eq.s32.totalorder %s32, 0
    %s35 = sadd.s32 %s34, 1
    %s36 = scalar_select %p33, %s34, %s35
    %p39 = pneg %p33
    %p40 = scmp.eq.s32.totalorder %s10, 1
    %p41 = por %p39, %p40
    %p42 = scmp.ne.s32.totalorder %s34, %s37
    %p43 = scmp.eq.s32.totalorder %s10, 0
    %p44 = por %p42, %p43
    %p45 = scmp.ne.s32.totalorder %s34, %s37
    %p46 = scmp.eq.s32.totalorder %s15, 1
    %p47 = por %p45, %p46
    %p48 = scmp.ne.s32.totalorder %s37, %s38
    %p49 = scmp.eq.s32.totalorder %s15, 0
    %p50 = por %p48, %p49
    %p51 = scmp.ne.s32.totalorder %s37, %s38
    %p52 = scmp.eq.s32.totalorder %s16, 1
    %p53 = por %p51, %p52
    %p55 = scmp.ne.s32.totalorder %s38, %s54
    %p56 = scmp.eq.s32.totalorder %s16, 0
    %p57 = por %p55, %p56
    %s58 = ssub.s32 %s17, %s29
    %s59 = ssub.s32 %s18, %s25
    %s60 = sor.u32 %s58, %s59
    %p61 = scmp.eq.s32.totalorder %s60, 0
    %s63 = sadd.s32 %s62, 1
    %s64 = scalar_select %p61, %s62, %s63
    %p67 = pneg %p61
    %p68 = scmp.eq.s32.totalorder %s10, 1
    %p69 = por %p67, %p68
    %p70 = scmp.ne.s32.totalorder %s62, %s65
    %p71 = scmp.eq.s32.totalorder %s10, 0
    %p72 = por %p70, %p71
    %p73 = scmp.ne.s32.totalorder %s62, %s65
    %p74 = scmp.eq.s32.totalorder %s15, 1
    %p75 = por %p73, %p74
    %p76 = scmp.ne.s32.totalorder %s65, %s66
    %p77 = scmp.eq.s32.totalorder %s15, 0
    %p78 = por %p76, %p77
    %p79 = scmp.ne.s32.totalorder %s65, %s66
    %p80 = scmp.eq.s32.totalorder %s16, 1
    %p81 = por %p79, %p80
    %p83 = scmp.ne.s32.totalorder %s66, %s82
    %p84 = scmp.eq.s32.totalorder %s16, 0
    %p85 = por %p83, %p84
    %s86 = ssub.s32 %s17, %s29
    %s87 = ssub.s32 %s18, %s25
    %s88 = sor.u32 %s86, %s87
    %p89 = scmp.eq.s32.totalorder %s88, 0
    %s91 = sadd.s32 %s90, 1
    %s92 = scalar_select %p89, %s90, %s91
    %p95 = pneg %p89
    %p96 = scmp.eq.s32.totalorder %s10, 1
    %p97 = por %p95, %p96
    %p98 = scmp.ne.s32.totalorder %s90, %s93
    %p99 = scmp.eq.s32.totalorder %s10, 0
    %p100 = por %p98, %p99
    %p101 = scmp.ne.s32.totalorder %s90, %s93
    %p102 = scmp.eq.s32.totalorder %s15, 1
    %p103 = por %p101, %p102
    %p104 = scmp.ne.s32.totalorder %s93, %s94
    %p105 = scmp.eq.s32.totalorder %s15, 0
    %p106 = por %p104, %p105
    %p107 = scmp.ne.s32.totalorder %s93, %s94
    %p108 = scmp.eq.s32.totalorder %s16, 1
    %p109 = por %p107, %p108
    %p111 = scmp.ne.s32.totalorder %s94, %s110
    %p112 = scmp.eq.s32.totalorder %s16, 0
    %p113 = por %p111, %p112
    %s114 = ssub.s32 %s17, %s29
    %s115 = ssub.s32 %s18, %s25
    %s116 = sor.u32 %s114, %s115
    %p117 = scmp.eq.s32.totalorder %s116, 0
    %s119 = sadd.s32 %s118, 1
    %s120 = scalar_select %p117, %s118, %s119
    %p123 = pneg %p117
    %p124 = scmp.eq.s32.totalorder %s10, 1
    %p125 = por %p123, %p124
    %p126 = scmp.ne.s32.totalorder %s118, %s121
    %p127 = scmp.eq.s32.totalorder %s10, 0
    %p128 = por %p126, %p127
    %p129 = scmp.ne.s32.totalorder %s118, %s121
    %p130 = scmp.eq.s32.totalorder %s15, 1
    %p131 = por %p129, %p130
    %p132 = scmp.ne.s32.totalorder %s121, %s122
    %p133 = scmp.eq.s32.totalorder %s15, 0
    %p134 = por %p132, %p133
    %p135 = scmp.ne.s32.totalorder %s121, %s122
    %p136 = scmp.eq.s32.totalorder %s16, 1
    %p137 = por %p135, %p136
    %p139 = scmp.ne.s32.totalorder %s122, %s138
    %p140 = scmp.eq.s32.totalorder %s16, 0
    %p141 = por %p139, %p140
    %p142 = scmp.le.s32.totalorder 1, %s10
    %p143 = scmp.lt.s32.totalorder %s10, 3
    %p144 = pnand %p142, %p143
    %p145 = pneg %p144
    // Predicated region
    $region9: #{_forward_core.3} parent=5 // pred_check
      _
    $region10: #{_forward_core.3} parent=5 // pred_check_branch
      %147 = sbr.rel (%p144) target = $region12
    $region11: #{_forward_core.3} parent=5 // pred_region
      %s148 = ssub.s32 %s10, 1
    $region12: #{_forward_core.3} parent=5 // pred_fallthru
      _
    %p149 = scmp.lt.s32.totalorder %s10, 2
    // Predicated region
    $region13: #{_forward_core.3} parent=5 // pred_check
      %p150 = pneg %p149
    $region14: #{_forward_core.3} parent=5 // pred_check_branch
      %152 = sbr.rel (%p150) target = $region16
    $region15: #{_forward_core.3} parent=5 // pred_region
      // Predicated region
      $region17: #{_forward_core.3} parent=15 // pred_check
        %p153 = pneg %p44
      $region18: #{_forward_core.3} parent=15 // pred_check_branch
        %155 = sbr.rel (%p153) target = $region20
      $region19: #{_forward_core.3} parent=15 // pred_region
        %s156 = smul.u32 2, %s18
        %p157 = scmp.lt.s32.totalorder %s17, 1
        %s158 = scalar_select %p157, %s17, 1
        %p159 = scmp.lt.s32.totalorder %s156, 1
        %s160 = scalar_select %p159, %s156, 1
        %s161 = smul.addr %s158, 2
        %s162 = sadd.s32 %s160, %s161
        %s163 = smul.addr %s162, 8
        %s164 = scalar_lea.vmem %s0, %s163
        %s165 = smul.u32 2, %s18
      $region20: #{_forward_core.3} parent=15 // pred_fallthru
        _
      // Predicated region
      $region21: #{_forward_core.3} parent=15 // pred_check
        %p166 = pneg %p72
      $region22: #{_forward_core.3} parent=15 // pred_check_branch
        %168 = sbr.rel (%p166) target = $region24
      $region23: #{_forward_core.3} parent=15 // pred_region
        %s169 = smul.u32 2, %s18
        %p170 = scmp.lt.s32.totalorder %s17, 1
        %s171 = scalar_select %p170, %s17, 1
        %p172 = scmp.lt.s32.totalorder %s169, 1
        %s173 = scalar_select %p172, %s169, 1
        %s174 = smul.addr %s171, 2
        %s175 = sadd.s32 %s173, %s174
        %s176 = smul.addr %s175, 8
        %s177 = scalar_lea.vmem %s1, %s176
        %s178 = smul.u32 2, %s18
      $region24: #{_forward_core.3} parent=15 // pred_fallthru
        _
    $region16: #{_forward_core.3} parent=5 // pred_fallthru
      _
    %p179 = scmp.le.s32.totalorder 1, %s10
    %p180 = scmp.lt.s32.totalorder %s10, 3
    %p181 = pnand %p179, %p180
    %p182 = pneg %p181
    // Predicated region
    $region25: #{_forward_core.3} parent=5 // pred_check
      _
    $region26: #{_forward_core.3} parent=5 // pred_check_branch
      %184 = sbr.rel (%p181) target = $region28
    $region27: #{_forward_core.3} parent=5 // pred_region
      %s185 = ssub.s32 %s10, 1
      %s186 = smul.u32 2, %s20
      %p187 = scmp.lt.s32.totalorder %s19, 1
      %s188 = scalar_select %p187, %s19, 1
      %p189 = scmp.lt.s32.totalorder %s186, 1
      %s190 = scalar_select %p189, %s186, 1
      %s191 = smul.addr %s188, 2
      %s192 = sadd.s32 %s190, %s191
      %s193 = smul.addr %s192, 8
      %s194 = scalar_lea.vmem %s0, %s193
      %p195 = pneg %p50
      %p196 = pneg %p47
      %s197 = smul.u32 2, %s20
      %p198 = scmp.lt.s32.totalorder %s19, 1
      %s199 = scalar_select %p198, %s19, 1
      %p200 = scmp.lt.s32.totalorder %s197, 1
      %s201 = scalar_select %p200, %s197, 1
      %s202 = smul.addr %s199, 2
      %s203 = sadd.s32 %s201, %s202
      %s204 = smul.addr %s203, 8
      %s205 = scalar_lea.vmem %s1, %s204
      %p206 = pneg %p78
      %p207 = pneg %p75
      %p208 = pneg %p106
      %p209 = pneg %p103
      %s210 = smul.u32 2, %s20
      %p211 = scmp.lt.s32.totalorder %s19, 1
      %s212 = scalar_select %p211, %s19, 1
      %p213 = scmp.lt.s32.totalorder %s210, 1
      %s214 = scalar_select %p213, %s210, 1
      %s215 = smul.addr %s212, 2
      %s216 = sadd.s32 %s214, %s215
      %s217 = smul.addr %s216, 8
      %s218 = scalar_lea.vmem %s2, %s217
      %p219 = pneg %p134
      %p220 = pneg %p131
      %s221 = smul.u32 2, %s20
      %p222 = scmp.lt.s32.totalorder %s19, 1
      %s223 = scalar_select %p222, %s19, 1
      %p224 = scmp.lt.s32.totalorder %s221, 1
      %s225 = scalar_select %p224, %s221, 1
      %s226 = smul.addr %s223, 2
      %s227 = sadd.s32 %s225, %s226
      %s228 = smul.addr %s227, 8
      %s229 = scalar_lea.vmem %s3, %s228
      %s230 = smul.u32 2, %s20
      %p231 = scmp.lt.s32.totalorder %s19, 1
      %s232 = scalar_select %p231, %s19, 1
      %p233 = scmp.lt.s32.totalorder %s230, 1
      %s234 = scalar_select %p233, %s230, 1
      %s235 = smul.addr %s232, 2
      %s236 = sadd.s32 %s234, %s235
      %s237 = smul.addr %s236, 8
      %s238 = scalar_lea.vmem %s0, %s237
      %s239 = smul.u32 2, %s20
      %s240 = smul.u32 2, %s20
      %p241 = scmp.lt.s32.totalorder %s19, 1
      %s242 = scalar_select %p241, %s19, 1
      %p243 = scmp.lt.s32.totalorder %s240, 1
      %s244 = scalar_select %p243, %s240, 1
      %s245 = smul.addr %s242, 2
      %s246 = sadd.s32 %s244, %s245
      %s247 = smul.addr %s246, 8
      %s248 = scalar_lea.vmem %s1, %s247
      %s249 = smul.u32 2, %s20
      %s250 = smul.u32 2, %s20
      %p251 = scmp.lt.s32.totalorder %s19, 1
      %s252 = scalar_select %p251, %s19, 1
      %p253 = scmp.lt.s32.totalorder %s250, 1
      %s254 = scalar_select %p253, %s250, 1
      %s255 = smul.addr %s252, 2
      %s256 = sadd.s32 %s254, %s255
      %s257 = smul.addr %s256, 8
      %s258 = scalar_lea.vmem %s2, %s257
      %s259 = smul.u32 2, %s20
      %s260 = smul.u32 2, %s20
      %p261 = scmp.lt.s32.totalorder %s19, 1
      %s262 = scalar_select %p261, %s19, 1
      %p263 = scmp.lt.s32.totalorder %s260, 1
      %s264 = scalar_select %p263, %s260, 1
      %s265 = smul.addr %s262, 2
      %s266 = sadd.s32 %s264, %s265
      %s267 = smul.addr %s266, 8
      %s268 = scalar_lea.vmem %s3, %s267
      %s269 = smul.u32 2, %s20
      %p270 = scmp.eq.s32.totalorder %s20, 0
      // Predicated region
      $region29: #{_forward_core.3} parent=27 // pred_check
        %p271 = pneg %p270
      $region30: #{_forward_core.3} parent=27 // pred_check_branch
        %273 = sbr.rel (%p271) target = $region32
      $region31: #{_forward_core.3} parent=27 // pred_region
        %vm274 = vcmask 0
        %275 = vst.msk [vmem:[#allocation2] sm:$0x1] %vm274, 0.0
        %vm276 = vcmask 253952
        %277 = vst.msk [vmem:[#allocation3] sm:$0x1] %vm276, 0.0
      $region32: #{_forward_core.3} parent=27 // pred_fallthru
        _
      %v278 = vld [vmem:[#allocation2] sm:$0x1]
      %v279 = vld [vmem:[#allocation3] sm:$0x1]
      %v280 = vld [vmem:[%s238] sm:$0x1]
      %v281 = vld [vmem:[%s248] sm:$0x1]
      %v282 = vsub.f32 1.0, %v278
      %v283 = vadd.f32 %v278, %v280
      %vm284 = vcmask 0
      %285 = vst.msk [vmem:[%s258] sm:$0x1] %vm284, %v283
      %vm286 = vcmp.ge.f32.partialorder %v283, 1.0
      %v287 = vsel %vm286, %v282, %v280
      %v288 = vsub.f32 %v280, %v287
      %290 = vset.pattern.permute.xlu0 0
      %291 = vperm.xlu0 %290, %v287
      %v292 = vpop.permute.xlu0 %291
      %v294 = vperm.slane %v292, 0
      %v295 = vmul.f32 %v294, %v281
      %v296 = vadd.f32 %v279, %v295
      %vm297 = vcmask 253952
      %298 = vst.msk [vmem:[%s268] sm:$0x1] %vm297, %v296
      %300 = vset.pattern.permute.xlu0 0
      %301 = vperm.xlu0 %300, %v288
      %v302 = vpop.permute.xlu0 %301
      %v304 = vmul.f32 %v302, %v281
      %v305 = vsel %vm286, 1, 0
      %306 = vset.pattern.permute.xlu0 0
      %307 = vperm.xlu0 %306, %v305
      %v308 = vpop.permute.xlu0 %307
      %v309 = vperm.slane %v308, 0
      %vm310 = vcmp.eq.s32.totalorder %v309, 1
      %v311 = vsel %vm310, %v304, %v296
      %v312 = vsub.f32 %v283, 1.0
      %v313 = vsel %vm286, %v312, %v283
      %v314 = vld [vmem:[%s238 + $0x1] sm:$0x1]
      %v315 = vld [vmem:[%s248 + $0x1] sm:$0x1]
      %v316 = vsub.f32 1.0, %v313
      %v317 = vadd.f32 %v313, %v314
      %318 = vst.msk [vmem:[%s258 + $0x1] sm:$0x1] %vm284, %v317
      %vm319 = vcmp.ge.f32.partialorder %v317, 1.0
      %v320 = vsel %vm319, %v316, %v314
      %v321 = vsub.f32 %v314, %v320
      %323 = vset.pattern.permute.xlu0 0
      %324 = vperm.xlu0 %323, %v320
      %v325 = vpop.permute.xlu0 %324
      %v327 = vperm.slane %v325, 0
      %v328 = vmul.f32 %v327, %v315
      %v329 = vadd.f32 %v311, %v328
      %330 = vst.msk [vmem:[%s268 + $0x1] sm:$0x1] %vm297, %v329
      %332 = vset.pattern.permute.xlu0 0
      %333 = vperm.xlu0 %332, %v321
      %v334 = vpop.permute.xlu0 %333
      %v336 = vmul.f32 %v334, %v315
      %v337 = vsel %vm319, 1, 0
      %338 = vset.pattern.permute.xlu0 0
      %339 = vperm.xlu0 %338, %v337
      %v340 = vpop.permute.xlu0 %339
      %v341 = vperm.slane %v340, 0
      %vm342 = vcmp.eq.s32.totalorder %v341, 1
      %v343 = vsel %vm342, %v336, %v329
      %v344 = vsub.f32 %v317, 1.0
      %v345 = vsel %vm319, %v344, %v317
      %v346 = vld [vmem:[%s238 + $0x2] sm:$0x1]
      %v347 = vld [vmem:[%s248 + $0x2] sm:$0x1]
      %v348 = vsub.f32 1.0, %v345
      %v349 = vadd.f32 %v345, %v346
      %350 = vst.msk [vmem:[%s258 + $0x2] sm:$0x1] %vm284, %v349
      %vm351 = vcmp.ge.f32.partialorder %v349, 1.0
      %v352 = vsel %vm351, %v348, %v346
      %v353 = vsub.f32 %v346, %v352
      %355 = vset.pattern.permute.xlu0 0
      %356 = vperm.xlu0 %355, %v352
      %v357 = vpop.permute.xlu0 %356
      %v359 = vperm.slane %v357, 0
      %v360 = vmul.f32 %v359, %v347
      %v361 = vadd.f32 %v343, %v360
      %362 = vst.msk [vmem:[%s268 + $0x2] sm:$0x1] %vm297, %v361
      %364 = vset.pattern.permute.xlu0 0
      %365 = vperm.xlu0 %364, %v353
      %v366 = vpop.permute.xlu0 %365
      %v368 = vmul.f32 %v366, %v347
      %v369 = vsel %vm351, 1, 0
      %370 = vset.pattern.permute.xlu0 0
      %371 = vperm.xlu0 %370, %v369
      %v372 = vpop.permute.xlu0 %371
      %v373 = vperm.slane %v372, 0
      %vm374 = vcmp.eq.s32.totalorder %v373, 1
      %v375 = vsel %vm374, %v368, %v361
      %v376 = vsub.f32 %v349, 1.0
      %v377 = vsel %vm351, %v376, %v349
      %v378 = vld [vmem:[%s238 + $0x3] sm:$0x1]
      %v379 = vld [vmem:[%s248 + $0x3] sm:$0x1]
      %v380 = vsub.f32 1.0, %v377
      %v381 = vadd.f32 %v377, %v378
      %382 = vst.msk [vmem:[%s258 + $0x3] sm:$0x1] %vm284, %v381
      %vm383 = vcmp.ge.f32.partialorder %v381, 1.0
      %v384 = vsel %vm383, %v380, %v378
      %v385 = vsub.f32 %v378, %v384
      %387 = vset.pattern.permute.xlu0 0
      %388 = vperm.xlu0 %387, %v384
      %v389 = vpop.permute.xlu0 %388
      %v391 = vperm.slane %v389, 0
      %v392 = vmul.f32 %v391, %v379
      %v393 = vadd.f32 %v375, %v392
      %394 = vst.msk [vmem:[%s268 + $0x3] sm:$0x1] %vm297, %v393
      %396 = vset.pattern.permute.xlu0 0
      %397 = vperm.xlu0 %396, %v385
      %v398 = vpop.permute.xlu0 %397
      %v400 = vmul.f32 %v398, %v379
      %v401 = vsel %vm383, 1, 0
      %402 = vset.pattern.permute.xlu0 0
      %403 = vperm.xlu0 %402, %v401
      %v404 = vpop.permute.xlu0 %403
      %v405 = vperm.slane %v404, 0
      %vm406 = vcmp.eq.s32.totalorder %v405, 1
      %v407 = vsel %vm406, %v400, %v393
      %v408 = vsub.f32 %v381, 1.0
      %v409 = vsel %vm383, %v408, %v381
      %v410 = vld [vmem:[%s238 + $0x4] sm:$0x1]
      %v411 = vld [vmem:[%s248 + $0x4] sm:$0x1]
      %v412 = vsub.f32 1.0, %v409
      %v413 = vadd.f32 %v409, %v410
      %414 = vst.msk [vmem:[%s258 + $0x4] sm:$0x1] %vm284, %v413
      %vm415 = vcmp.ge.f32.partialorder %v413, 1.0
      %v416 = vsel %vm415, %v412, %v410
      %v417 = vsub.f32 %v410, %v416
      %419 = vset.pattern.permute.xlu0 0
      %420 = vperm.xlu0 %419, %v416
      %v421 = vpop.permute.xlu0 %420
      %v423 = vperm.slane %v421, 0
      %v424 = vmul.f32 %v423, %v411
      %v425 = vadd.f32 %v407, %v424
      %426 = vst.msk [vmem:[%s268 + $0x4] sm:$0x1] %vm297, %v425
      %428 = vset.pattern.permute.xlu0 0
      %429 = vperm.xlu0 %428, %v417
      %v430 = vpop.permute.xlu0 %429
      %v432 = vmul.f32 %v430, %v411
      %v433 = vsel %vm415, 1, 0
      %434 = vset.pattern.permute.xlu0 0
      %435 = vperm.xlu0 %434, %v433
      %v436 = vpop.permute.xlu0 %435
      %v437 = vperm.slane %v436, 0
      %vm438 = vcmp.eq.s32.totalorder %v437, 1
      %v439 = vsel %vm438, %v432, %v425
      %v440 = vsub.f32 %v413, 1.0
      %v441 = vsel %vm415, %v440, %v413
      %v442 = vld [vmem:[%s238 + $0x5] sm:$0x1]
      %v443 = vld [vmem:[%s248 + $0x5] sm:$0x1]
      %v444 = vsub.f32 1.0, %v441
      %v445 = vadd.f32 %v441, %v442
      %446 = vst.msk [vmem:[%s258 + $0x5] sm:$0x1] %vm284, %v445
      %vm447 = vcmp.ge.f32.partialorder %v445, 1.0
      %v448 = vsel %vm447, %v444, %v442
      %v449 = vsub.f32 %v442, %v448
      %451 = vset.pattern.permute.xlu0 0
      %452 = vperm.xlu0 %451, %v448
      %v453 = vpop.permute.xlu0 %452
      %v455 = vperm.slane %v453, 0
      %v456 = vmul.f32 %v455, %v443
      %v457 = vadd.f32 %v439, %v456
      %458 = vst.msk [vmem:[%s268 + $0x5] sm:$0x1] %vm297, %v457
      %460 = vset.pattern.permute.xlu0 0
      %461 = vperm.xlu0 %460, %v449
      %v462 = vpop.permute.xlu0 %461
      %v464 = vmul.f32 %v462, %v443
      %v465 = vsel %vm447, 1, 0
      %466 = vset.pattern.permute.xlu0 0
      %467 = vperm.xlu0 %466, %v465
      %v468 = vpop.permute.xlu0 %467
      %v469 = vperm.slane %v468, 0
      %vm470 = vcmp.eq.s32.totalorder %v469, 1
      %v471 = vsel %vm470, %v464, %v457
      %v472 = vsub.f32 %v445, 1.0
      %v473 = vsel %vm447, %v472, %v445
      %v474 = vld [vmem:[%s238 + $0x6] sm:$0x1]
      %v475 = vld [vmem:[%s248 + $0x6] sm:$0x1]
      %v476 = vsub.f32 1.0, %v473
      %v477 = vadd.f32 %v473, %v474
      %478 = vst.msk [vmem:[%s258 + $0x6] sm:$0x1] %vm284, %v477
      %vm479 = vcmp.ge.f32.partialorder %v477, 1.0
      %v480 = vsel %vm479, %v476, %v474
      %v481 = vsub.f32 %v474, %v480
      %483 = vset.pattern.permute.xlu0 0
      %484 = vperm.xlu0 %483, %v480
      %v485 = vpop.permute.xlu0 %484
      %v487 = vperm.slane %v485, 0
      %v488 = vmul.f32 %v487, %v475
      %v489 = vadd.f32 %v471, %v488
      %490 = vst.msk [vmem:[%s268 + $0x6] sm:$0x1] %vm297, %v489
      %492 = vset.pattern.permute.xlu0 0
      %493 = vperm.xlu0 %492, %v481
      %v494 = vpop.permute.xlu0 %493
      %v496 = vmul.f32 %v494, %v475
      %v497 = vsel %vm479, 1, 0
      %498 = vset.pattern.permute.xlu0 0
      %499 = vperm.xlu0 %498, %v497
      %v500 = vpop.permute.xlu0 %499
      %v501 = vperm.slane %v500, 0
      %vm502 = vcmp.eq.s32.totalorder %v501, 1
      %v503 = vsel %vm502, %v496, %v489
      %v504 = vsub.f32 %v477, 1.0
      %v505 = vsel %vm479, %v504, %v477
      %v506 = vld [vmem:[%s238 + $0x7] sm:$0x1]
      %v507 = vld [vmem:[%s248 + $0x7] sm:$0x1]
      %v508 = vsub.f32 1.0, %v505
      %v509 = vadd.f32 %v505, %v506
      %510 = vst.msk [vmem:[%s258 + $0x7] sm:$0x1] %vm284, %v509
      %vm511 = vcmp.ge.f32.partialorder %v509, 1.0
      %v512 = vsel %vm511, %v508, %v506
      %v513 = vsub.f32 %v506, %v512
      %515 = vset.pattern.permute.xlu0 0
      %516 = vperm.xlu0 %515, %v512
      %v517 = vpop.permute.xlu0 %516
      %v519 = vperm.slane %v517, 0
      %v520 = vmul.f32 %v519, %v507
      %v521 = vadd.f32 %v503, %v520
      %522 = vst.msk [vmem:[%s268 + $0x7] sm:$0x1] %vm297, %v521
      %524 = vset.pattern.permute.xlu0 0
      %525 = vperm.xlu0 %524, %v513
      %v526 = vpop.permute.xlu0 %525
      %v528 = vmul.f32 %v526, %v507
      %v529 = vsel %vm511, 1, 0
      %530 = vset.pattern.permute.xlu0 0
      %531 = vperm.xlu0 %530, %v529
      %v532 = vpop.permute.xlu0 %531
      %v533 = vperm.slane %v532, 0
      %vm534 = vcmp.eq.s32.totalorder %v533, 1
      %v535 = vsel %vm534, %v528, %v521
      %v536 = vsub.f32 %v509, 1.0
      %v537 = vsel %vm511, %v536, %v509
      %v538 = vld [vmem:[%s238 + $0x8] sm:$0x1]
      %v539 = vld [vmem:[%s248 + $0x8] sm:$0x1]
      %v540 = vsub.f32 1.0, %v537
      %v541 = vadd.f32 %v537, %v538
      %542 = vst.msk [vmem:[%s258 + $0x8] sm:$0x1] %vm284, %v541
      %vm543 = vcmp.ge.f32.partialorder %v541, 1.0
      %v544 = vsel %vm543, %v540, %v538
      %v545 = vsub.f32 %v538, %v544
      %547 = vset.pattern.permute.xlu0 0
      %548 = vperm.xlu0 %547, %v544
      %v549 = vpop.permute.xlu0 %548
      %v551 = vperm.slane %v549, 0
      %v552 = vmul.f32 %v551, %v539
      %v553 = vadd.f32 %v535, %v552
      %554 = vst.msk [vmem:[%s268 + $0x8] sm:$0x1] %vm297, %v553
      %556 = vset.pattern.permute.xlu0 0
      %557 = vperm.xlu0 %556, %v545
      %v558 = vpop.permute.xlu0 %557
      %v560 = vmul.f32 %v558, %v539
      %v561 = vsel %vm543, 1, 0
      %562 = vset.pattern.permute.xlu0 0
      %563 = vperm.xlu0 %562, %v561
      %v564 = vpop.permute.xlu0 %563
      %v565 = vperm.slane %v564, 0
      %vm566 = vcmp.eq.s32.totalorder %v565, 1
      %v567 = vsel %vm566, %v560, %v553
      %v568 = vsub.f32 %v541, 1.0
      %v569 = vsel %vm543, %v568, %v541
      %v570 = vld [vmem:[%s238 + $0x9] sm:$0x1]
      %v571 = vld [vmem:[%s248 + $0x9] sm:$0x1]
      %v572 = vsub.f32 1.0, %v569
      %v573 = vadd.f32 %v569, %v570
      %574 = vst.msk [vmem:[%s258 + $0x9] sm:$0x1] %vm284, %v573
      %vm575 = vcmp.ge.f32.partialorder %v573, 1.0
      %v576 = vsel %vm575, %v572, %v570
      %v577 = vsub.f32 %v570, %v576
      %579 = vset.pattern.permute.xlu0 0
      %580 = vperm.xlu0 %579, %v576
      %v581 = vpop.permute.xlu0 %580
      %v583 = vperm.slane %v581, 0
      %v584 = vmul.f32 %v583, %v571
      %v585 = vadd.f32 %v567, %v584
      %586 = vst.msk [vmem:[%s268 + $0x9] sm:$0x1] %vm297, %v585
      %588 = vset.pattern.permute.xlu0 0
      %589 = vperm.xlu0 %588, %v577
      %v590 = vpop.permute.xlu0 %589
      %v592 = vmul.f32 %v590, %v571
      %v593 = vsel %vm575, 1, 0
      %594 = vset.pattern.permute.xlu0 0
      %595 = vperm.xlu0 %594, %v593
      %v596 = vpop.permute.xlu0 %595
      %v597 = vperm.slane %v596, 0
      %vm598 = vcmp.eq.s32.totalorder %v597, 1
      %v599 = vsel %vm598, %v592, %v585
      %v600 = vsub.f32 %v573, 1.0
      %v601 = vsel %vm575, %v600, %v573
      %v602 = vld [vmem:[%s238 + $0xa] sm:$0x1]
      %v603 = vld [vmem:[%s248 + $0xa] sm:$0x1]
      %v604 = vsub.f32 1.0, %v601
      %v605 = vadd.f32 %v601, %v602
      %606 = vst.msk [vmem:[%s258 + $0xa] sm:$0x1] %vm284, %v605
      %vm607 = vcmp.ge.f32.partialorder %v605, 1.0
      %v608 = vsel %vm607, %v604, %v602
      %v609 = vsub.f32 %v602, %v608
      %611 = vset.pattern.permute.xlu0 0
      %612 = vperm.xlu0 %611, %v608
      %v613 = vpop.permute.xlu0 %612
      %v615 = vperm.slane %v613, 0
      %v616 = vmul.f32 %v615, %v603
      %v617 = vadd.f32 %v599, %v616
      %618 = vst.msk [vmem:[%s268 + $0xa] sm:$0x1] %vm297, %v617
      %620 = vset.pattern.permute.xlu0 0
      %621 = vperm.xlu0 %620, %v609
      %v622 = vpop.permute.xlu0 %621
      %v624 = vmul.f32 %v622, %v603
      %v625 = vsel %vm607, 1, 0
      %626 = vset.pattern.permute.xlu0 0
      %627 = vperm.xlu0 %626, %v625
      %v628 = vpop.permute.xlu0 %627
      %v629 = vperm.slane %v628, 0
      %vm630 = vcmp.eq.s32.totalorder %v629, 1
      %v631 = vsel %vm630, %v624, %v617
      %v632 = vsub.f32 %v605, 1.0
      %v633 = vsel %vm607, %v632, %v605
      %v634 = vld [vmem:[%s238 + $0xb] sm:$0x1]
      %v635 = vld [vmem:[%s248 + $0xb] sm:$0x1]
      %v636 = vsub.f32 1.0, %v633
      %v637 = vadd.f32 %v633, %v634
      %638 = vst.msk [vmem:[%s258 + $0xb] sm:$0x1] %vm284, %v637
      %vm639 = vcmp.ge.f32.partialorder %v637, 1.0
      %v640 = vsel %vm639, %v636, %v634
      %v641 = vsub.f32 %v634, %v640
      %643 = vset.pattern.permute.xlu0 0
      %644 = vperm.xlu0 %643, %v640
      %v645 = vpop.permute.xlu0 %644
      %v647 = vperm.slane %v645, 0
      %v648 = vmul.f32 %v647, %v635
      %v649 = vadd.f32 %v631, %v648
      %650 = vst.msk [vmem:[%s268 + $0xb] sm:$0x1] %vm297, %v649
      %652 = vset.pattern.permute.xlu0 0
      %653 = vperm.xlu0 %652, %v641
      %v654 = vpop.permute.xlu0 %653
      %v656 = vmul.f32 %v654, %v635
      %v657 = vsel %vm639, 1, 0
      %658 = vset.pattern.permute.xlu0 0
      %659 = vperm.xlu0 %658, %v657
      %v660 = vpop.permute.xlu0 %659
      %v661 = vperm.slane %v660, 0
      %vm662 = vcmp.eq.s32.totalorder %v661, 1
      %v663 = vsel %vm662, %v656, %v649
      %v664 = vsub.f32 %v637, 1.0
      %v665 = vsel %vm639, %v664, %v637
      %v666 = vld [vmem:[%s238 + $0xc] sm:$0x1]
      %v667 = vld [vmem:[%s248 + $0xc] sm:$0x1]
      %v668 = vsub.f32 1.0, %v665
      %v669 = vadd.f32 %v665, %v666
      %670 = vst.msk [vmem:[%s258 + $0xc] sm:$0x1] %vm284, %v669
      %vm671 = vcmp.ge.f32.partialorder %v669, 1.0
      %v672 = vsel %vm671, %v668, %v666
      %v673 = vsub.f32 %v666, %v672
      %675 = vset.pattern.permute.xlu0 0
      %676 = vperm.xlu0 %675, %v672
      %v677 = vpop.permute.xlu0 %676
      %v679 = vperm.slane %v677, 0
      %v680 = vmul.f32 %v679, %v667
      %v681 = vadd.f32 %v663, %v680
      %682 = vst.msk [vmem:[%s268 + $0xc] sm:$0x1] %vm297, %v681
      %684 = vset.pattern.permute.xlu0 0
      %685 = vperm.xlu0 %684, %v673
      %v686 = vpop.permute.xlu0 %685
      %v688 = vmul.f32 %v686, %v667
      %v689 = vsel %vm671, 1, 0
      %690 = vset.pattern.permute.xlu0 0
      %691 = vperm.xlu0 %690, %v689
      %v692 = vpop.permute.xlu0 %691
      %v693 = vperm.slane %v692, 0
      %vm694 = vcmp.eq.s32.totalorder %v693, 1
      %v695 = vsel %vm694, %v688, %v681
      %v696 = vsub.f32 %v669, 1.0
      %v697 = vsel %vm671, %v696, %v669
      %v698 = vld [vmem:[%s238 + $0xd] sm:$0x1]
      %v699 = vld [vmem:[%s248 + $0xd] sm:$0x1]
      %v700 = vsub.f32 1.0, %v697
      %v701 = vadd.f32 %v697, %v698
      %702 = vst.msk [vmem:[%s258 + $0xd] sm:$0x1] %vm284, %v701
      %vm703 = vcmp.ge.f32.partialorder %v701, 1.0
      %v704 = vsel %vm703, %v700, %v698
      %v705 = vsub.f32 %v698, %v704
      %707 = vset.pattern.permute.xlu0 0
      %708 = vperm.xlu0 %707, %v704
      %v709 = vpop.permute.xlu0 %708
      %v711 = vperm.slane %v709, 0
      %v712 = vmul.f32 %v711, %v699
      %v713 = vadd.f32 %v695, %v712
      %714 = vst.msk [vmem:[%s268 + $0xd] sm:$0x1] %vm297, %v713
      %716 = vset.pattern.permute.xlu0 0
      %717 = vperm.xlu0 %716, %v705
      %v718 = vpop.permute.xlu0 %717
      %v720 = vmul.f32 %v718, %v699
      %v721 = vsel %vm703, 1, 0
      %722 = vset.pattern.permute.xlu0 0
      %723 = vperm.xlu0 %722, %v721
      %v724 = vpop.permute.xlu0 %723
      %v725 = vperm.slane %v724, 0
      %vm726 = vcmp.eq.s32.totalorder %v725, 1
      %v727 = vsel %vm726, %v720, %v713
      %v728 = vsub.f32 %v701, 1.0
      %v729 = vsel %vm703, %v728, %v701
      %v730 = vld [vmem:[%s238 + $0xe] sm:$0x1]
      %v731 = vld [vmem:[%s248 + $0xe] sm:$0x1]
      %v732 = vsub.f32 1.0, %v729
      %v733 = vadd.f32 %v729, %v730
      %734 = vst.msk [vmem:[%s258 + $0xe] sm:$0x1] %vm284, %v733
      %vm735 = vcmp.ge.f32.partialorder %v733, 1.0
      %v736 = vsel %vm735, %v732, %v730
      %v737 = vsub.f32 %v730, %v736
      %739 = vset.pattern.permute.xlu0 0
      %740 = vperm.xlu0 %739, %v736
      %v741 = vpop.permute.xlu0 %740
      %v743 = vperm.slane %v741, 0
      %v744 = vmul.f32 %v743, %v731
      %v745 = vadd.f32 %v727, %v744
      %746 = vst.msk [vmem:[%s268 + $0xe] sm:$0x1] %vm297, %v745
      %748 = vset.pattern.permute.xlu0 0
      %749 = vperm.xlu0 %748, %v737
      %v750 = vpop.permute.xlu0 %749
      %v752 = vmul.f32 %v750, %v731
      %v753 = vsel %vm735, 1, 0
      %754 = vset.pattern.permute.xlu0 0
      %755 = vperm.xlu0 %754, %v753
      %v756 = vpop.permute.xlu0 %755
      %v757 = vperm.slane %v756, 0
      %vm758 = vcmp.eq.s32.totalorder %v757, 1
      %v759 = vsel %vm758, %v752, %v745
      %v760 = vsub.f32 %v733, 1.0
      %v761 = vsel %vm735, %v760, %v733
      %v762 = vld [vmem:[%s238 + $0xf] sm:$0x1]
      %v763 = vld [vmem:[%s248 + $0xf] sm:$0x1]
      %v764 = vsub.f32 1.0, %v761
      %v765 = vadd.f32 %v761, %v762
      %766 = vst.msk [vmem:[%s258 + $0xf] sm:$0x1] %vm284, %v765
      %vm767 = vcmp.ge.f32.partialorder %v765, 1.0
      %v768 = vsel %vm767, %v764, %v762
      %v769 = vsub.f32 %v762, %v768
      %771 = vset.pattern.permute.xlu0 0
      %772 = vperm.xlu0 %771, %v768
      %v773 = vpop.permute.xlu0 %772
      %v775 = vperm.slane %v773, 0
      %v776 = vmul.f32 %v775, %v763
      %v777 = vadd.f32 %v759, %v776
      %778 = vst.msk [vmem:[%s268 + $0xf] sm:$0x1] %vm297, %v777
      %780 = vset.pattern.permute.xlu0 0
      %781 = vperm.xlu0 %780, %v769
      %v782 = vpop.permute.xlu0 %781
      %v784 = vmul.f32 %v782, %v763
      %v785 = vsel %vm767, 1, 0
      %786 = vset.pattern.permute.xlu0 0
      %787 = vperm.xlu0 %786, %v785
      %v788 = vpop.permute.xlu0 %787
      %v789 = vperm.slane %v788, 0
      %vm790 = vcmp.eq.s32.totalorder %v789, 1
      %v791 = vsel %vm790, %v784, %v777
      %v792 = vsub.f32 %v765, 1.0
      %v793 = vsel %vm767, %v792, %v765
      %794 = vst.msk [vmem:[#allocation2] sm:$0x1] %vm284, %v793
      %795 = vst.msk [vmem:[#allocation3] sm:$0x1] %vm297, %v791
      %s796 = smul.u32 2, %s20
      %p797 = scmp.lt.s32.totalorder %s19, 1
      %s798 = scalar_select %p797, %s19, 1
      %p799 = scmp.lt.s32.totalorder %s796, 1
      %s800 = scalar_select %p799, %s796, 1
      %s801 = smul.addr %s798, 2
      %s802 = sadd.s32 %s800, %s801
      %s803 = smul.addr %s802, 8
      %s804 = scalar_lea.vmem %s2, %s803
      %s805 = smul.u32 2, %s20
      %p806 = scmp.lt.s32.totalorder %s19, 1
      %s807 = scalar_select %p806, %s19, 1
      %p808 = scmp.lt.s32.totalorder %s805, 1
      %s809 = scalar_select %p808, %s805, 1
      %s810 = smul.addr %s807, 2
      %s811 = sadd.s32 %s809, %s810
      %s812 = smul.addr %s811, 8
      %s813 = scalar_lea.vmem %s3, %s812
      // Predicated region
      $region33: #{_forward_core.3} parent=27 // pred_check
        %p814 = pneg %p103
      $region34: #{_forward_core.3} parent=27 // pred_check_branch
        %816 = sbr.rel (%p814) target = $region36
      $region35: #{_forward_core.3} parent=27 // pred_region
        %s817 = smul.u32 2, %s20
      $region36: #{_forward_core.3} parent=27 // pred_fallthru
        _
      // Predicated region
      $region37: #{_forward_core.3} parent=27 // pred_check
        %p818 = pneg %p131
      $region38: #{_forward_core.3} parent=27 // pred_check_branch
        %820 = sbr.rel (%p818) target = $region40
      $region39: #{_forward_core.3} parent=27 // pred_region
        %s821 = smul.u32 2, %s20
      $region40: #{_forward_core.3} parent=27 // pred_fallthru
        _
    $region28: #{_forward_core.3} parent=5 // pred_fallthru
      _
    %p822 = scmp.le.s32.totalorder 2, %s10
    // Predicated region
    $region41: #{_forward_core.3} parent=5 // pred_check
      %p823 = pneg %p822
    $region42: #{_forward_core.3} parent=5 // pred_check_branch
      %825 = sbr.rel (%p823) target = $region44
    $region43: #{_forward_core.3} parent=5 // pred_region
      %s826 = ssub.s32 %s10, 2
      // Predicated region
      $region45: #{_forward_core.3} parent=43 // pred_check
        %p827 = pneg %p109
      $region46: #{_forward_core.3} parent=43 // pred_check_branch
        %829 = sbr.rel (%p827) target = $region48
      $region47: #{_forward_core.3} parent=43 // pred_region
        %s830 = smul.u32 2, %s22
        %p831 = scmp.lt.s32.totalorder %s21, 1
        %s832 = scalar_select %p831, %s21, 1
        %p833 = scmp.lt.s32.totalorder %s830, 1
        %s834 = scalar_select %p833, %s830, 1
        %s835 = smul.addr %s832, 2
        %s836 = sadd.s32 %s834, %s835
        %s837 = smul.addr %s836, 8
        %s838 = scalar_lea.vmem %s2, %s837
      $region48: #{_forward_core.3} parent=43 // pred_fallthru
        _
      // Predicated region
      $region49: #{_forward_core.3} parent=43 // pred_check
        %p839 = pneg %p137
      $region50: #{_forward_core.3} parent=43 // pred_check_branch
        %841 = sbr.rel (%p839) target = $region52
      $region51: #{_forward_core.3} parent=43 // pred_region
        %s842 = smul.u32 2, %s22
        %p843 = scmp.lt.s32.totalorder %s21, 1
        %s844 = scalar_select %p843, %s21, 1
        %p845 = scmp.lt.s32.totalorder %s842, 1
        %s846 = scalar_select %p845, %s842, 1
        %s847 = smul.addr %s844, 2
        %s848 = sadd.s32 %s846, %s847
        %s849 = smul.addr %s848, 8
        %s850 = scalar_lea.vmem %s3, %s849
      $region52: #{_forward_core.3} parent=43 // pred_fallthru
        _
    $region44: #{_forward_core.3} parent=5 // pred_fallthru
      _
  $region6: #{_forward_core.3} parent=0 // loop_footer
    %s14 = sadd.s32 1, %s10
  $region7: #{_forward_core.3} parent=0 // loop_footer_branch
    %9 = sbr.rel target = $region3
  $region8: #{_forward_core.3} parent=0 // loop_exit
    _

</llo_original>
